<compile_context>
chip_gen: v5e
topology: v5e:2x2
jax: 0.10.0
libtpu: 0.0.40
codegen_flags: <defaults>
</compile_context>

<pallas_src>
import functools
import math

import jax
import jax.numpy as jnp
from jax.experimental import pallas as pl
from jax.experimental.pallas import tpu as pltpu

LANE = 128       # lane width (last dim of a tile)
SUB_F32 = 8      # f32 min sublane tile
SUB_BF16 = 16    # bf16 min sublane tile


def _round_up(x, m):
    return (x + m - 1) // m * m


def _mxu_prefers_k256():
    """True on chips with a 256-deep MXU (v6e/v7x) where the concat-fused
    K=256 output matmul helps; False on v2-v5 (128-deep MXU)."""
    try:
        kind = jax.devices()[0].device_kind.lower()
    except Exception:
        return True
    return not any(s in kind for s in ("v2", "v3", "v4", "v5"))


# ----------------------------------------------------------------------------
# Fused forward kernel: embedding row-gather + all SAGEConv('mean') layers.
# ----------------------------------------------------------------------------
def _make_fused_kernel(layer_meta, n_gather, fuse_k, table_in_vmem, ring):
    """layer_meta: tuple of (dp, sp, f_in_p, f_out_p, relu) per layer."""
    n_layers = len(layer_meta)
    n_per = 4 if fuse_k else 5          # adj, inv_deg, weight(s), bias

    def kernel(ids_ref, emb_ref, *rest):
        layer_refs = rest[:n_per * n_layers]
        out_ref = rest[n_per * n_layers]
        h_gather = rest[n_per * n_layers + 1]              # VMEM [sp0, f_in_p] f32
        sems = None if table_in_vmem else rest[n_per * n_layers + 2]

        sp0, f_in_p = h_gather.shape
        # Explicitly zero padded rows of h (don't rely on zero adj columns).
        if sp0 > n_gather:
            h_gather[pl.ds(n_gather, sp0 - n_gather), :] = jnp.zeros(
                (sp0 - n_gather, f_in_p), jnp.float32)

        if table_in_vmem:
            # Table resident in VMEM: plain dynamic-row loads, no DMA
            # descriptors and no semaphores.
            for i in range(n_gather):
                h_gather[pl.ds(i, 1), :] = emb_ref[pl.ds(ids_ref[i], 1), :]
        else:
            # Table in HBM: per-row DMAs through a small semaphore ring so up
            # to `ring` transfers are in flight; padded ids are never fetched.
            def row_copy(i, slot):
                return pltpu.make_async_copy(
                    emb_ref.at[pl.ds(ids_ref[i], 1), :],
                    h_gather.at[pl.ds(i, 1), :],
                    sems.at[slot])
            for i in range(n_gather):
                slot = i % ring
                if i >= ring:
                    row_copy(i - ring, slot).wait()
                row_copy(i, slot).start()
            for i in range(max(n_gather - ring, 0), n_gather):
                row_copy(i, i % ring).wait()

        h = h_gather[...]               # [sp0, f_in_p] f32, stays on-chip

        for l, (dp, sp, fi_p, fo_p, relu) in enumerate(layer_meta):
            refs = layer_refs[l * n_per:(l + 1) * n_per]
            if fuse_k:
                adj_ref, inv_ref, w_ref, b_ref = refs
            else:
                adj_ref, inv_ref, ws_ref, wn_ref, b_ref = refs

            h_bf = h.astype(jnp.bfloat16)          # MXU operands in bf16
            # Neighbor feature SUM on the MXU (binary bf16 adjacency -> exact);
            # mean via host-precomputed f32 1/max(deg,1) (no A@ones matmul).
            agg = jnp.dot(adj_ref[...], h_bf,
                          preferred_element_type=jnp.float32)      # [dp, fi_p]
            neigh_bf = (agg * inv_ref[...]).astype(jnp.bfloat16)
            h_dst_bf = h_bf[:dp]                   # dst nodes = prefix of src

            if fuse_k:
                # K=256 fused matmul; x_cat assembled directly in bf16.
                x_cat = jnp.concatenate([h_dst_bf, neigh_bf], axis=-1)
                out = jnp.dot(x_cat, w_ref[...],
                              preferred_element_type=jnp.float32)
            else:
                # 128-deep-MXU chips: two separate matmuls, no concat copy.
                out = (jnp.dot(h_dst_bf, ws_ref[...],
                               preferred_element_type=jnp.float32)
                       + jnp.dot(neigh_bf, wn_ref[...],
                                 preferred_element_type=jnp.float32))
            out = out + b_ref[...]
            if relu:
                out = jnp.maximum(out, 0.0)        # activation for all but last
            # dropout: identity (eval mode)
            h = out                                # [dp, fo_p] f32, on-chip

        out_ref[...] = h.astype(out_ref.dtype)

    return kernel


# ----------------------------------------------------------------------------
# Host-side layout preparation (done once) + fused forward wrapper.
# ----------------------------------------------------------------------------
def prepare_params(params):
    """Pad feature dims to 128 lanes; keep both separate bf16 weights (for
    128-deep-MXU chips) and the stacked [[W_self];[W_neigh]] matrix (for
    256-deep-MXU chips); pad the embedding table to lane-dense rows."""
    emb = params["emb"]
    n_nodes, f_in = emb.shape
    f_in_p = _round_up(f_in, LANE)
    n_nodes_p = _round_up(n_nodes, SUB_F32)
    emb_p = jnp.zeros((n_nodes_p, f_in_p), jnp.float32).at[:n_nodes, :f_in].set(emb)

    layers = []
    in_p = f_in_p
    for lp in params["layers"]:
        fi, fo = lp["w_self"].shape
        fo_p = _round_up(fo, LANE)
        w_self_p = jnp.zeros((in_p, fo_p), jnp.bfloat16).at[:fi, :fo].set(
            lp["w_self"].astype(jnp.bfloat16))
        w_neigh_p = jnp.zeros((in_p, fo_p), jnp.bfloat16).at[:fi, :fo].set(
            lp["w_neigh"].astype(jnp.bfloat16))
        bias_p = jnp.zeros((1, fo_p), jnp.float32).at[:, :fo].set(
            lp["bias"].reshape(1, -1).astype(jnp.float32))
        layers.append({
            "w_self_p": w_self_p,
            "w_neigh_p": w_neigh_p,
            "w_cat": jnp.concatenate([w_self_p, w_neigh_p], axis=0),
            "bias_p": bias_p,
        })
        in_p = fo_p

    return {"emb_p": emb_p, "layers": layers,
            "n_out": params["layers"][-1]["w_self"].shape[1]}


def sage_forward(prepped, blocks_adj, input_nodes, *,
                 fuse_k=None,
                 force_hbm_table=False,
                 max_vmem_table_bytes=24 << 20,
                 single_buffer=True,
                 gather_ring=8):
    """Fused SAGE forward: one pallas_call for gather + all layers."""
    if fuse_k is None:
        fuse_k = _mxu_prefers_k256()

    emb_p = prepped["emb_p"]
    layers = prepped["layers"]
    n_layers = len(layers)
    assert len(blocks_adj) == n_layers

    f_in_p = emb_p.shape[1]
    n_src0 = int(input_nodes.shape[0])
    sp0 = _round_up(n_src0, LANE)          # src / contraction dim -> 128-padded
    ids = input_nodes.astype(jnp.int32)

    table_bytes = int(emb_p.size) * emb_p.dtype.itemsize
    table_in_vmem = (not force_hbm_table) and table_bytes <= max_vmem_table_bytes
    ring = max(1, min(gather_ring, n_src0))

    # --- Per-layer padded operands & metadata --------------------------------
    layer_meta, layer_ops = [], []
    sp, fi_p, n_src = sp0, f_in_p, n_src0
    for l, adj in enumerate(blocks_adj):
        n_dst, n_src_l = adj.shape
        assert n_src_l == n_src, "block src nodes must equal previous dst nodes"
        assert n_dst <= n_src_l, "DGL blocks keep dst nodes as a prefix of src"
        last = (l == n_layers - 1)
        # Intermediate dst dims become the next layer's src (contraction) dim
        # -> pad them to 128; the last layer only needs the bf16 sublane tile.
        dp = _round_up(n_dst, SUB_BF16 if last else LANE)
        adj_p = jnp.zeros((dp, sp), jnp.bfloat16).at[:n_dst, :n_src_l].set(
            adj.astype(jnp.bfloat16))                      # binary -> bf16 exact
        # Precompute 1/max(deg,1) on the host (f32, exact division).
        deg = jnp.sum(adj, axis=-1, keepdims=True)
        inv = jnp.zeros((dp, 1), jnp.float32).at[:n_dst].set(
            1.0 / jnp.maximum(deg, 1.0))
        lp = layers[l]
        fo_p = lp["bias_p"].shape[1]
        w_ops = [lp["w_cat"]] if fuse_k else [lp["w_self_p"], lp["w_neigh_p"]]
        layer_ops.append([adj_p, inv] + w_ops + [lp["bias_p"]])
        layer_meta.append((dp, sp, fi_p, fo_p, not last))
        sp, fi_p, n_src = dp, fo_p, n_dst

    dp_last, fo_last = layer_meta[-1][0], layer_meta[-1][3]
    flat_ops = [op for ops in layer_ops for op in ops]

    # --- VMEM budget (everything resident at grid=(1,)) ----------------------
    vmem_need = (table_bytes if table_in_vmem else 0)
    vmem_need += sum(int(o.size) * o.dtype.itemsize for o in flat_ops)
    vmem_need *= 2                                   # worst case double buffer
    vmem_need += 2 * dp_last * fo_last * 4 + sp0 * f_in_p * 4
    for (dp, sp_l, fi_l, fo_l, _) in layer_meta:     # rough live intermediates
        vmem_need += sp_l * fi_l * 2 + dp * (3 * fi_l + fo_l) * 4
    vmem_limit = int(min(100 << 20, max(48 << 20, 2 * vmem_need)))

    kernel = _make_fused_kernel(tuple(layer_meta), n_src0, fuse_k,
                                table_in_vmem, ring)

    def _build_and_call(use_single_buffer):
        # At grid=(1,) double-buffering the grid-invariant operands is pure
        # VMEM waste (matters on v7x's 64 MiB): request a single buffer.
        kw = ({"pipeline_mode": pl.Buffered(buffer_count=1)}
              if use_single_buffer else {})

        def vspec(shape):
            return pl.BlockSpec(shape, lambda i, ids_ref: (0, 0), **kw)

        in_specs = [vspec(tuple(emb_p.shape)) if table_in_vmem
                    else pl.BlockSpec(memory_space=pl.ANY)]
        in_specs += [vspec(tuple(o.shape)) for o in flat_ops]

        scratch = [pltpu.VMEM((sp0, f_in_p), jnp.float32)]
        if not table_in_vmem:
            scratch.append(pltpu.SemaphoreType.DMA((ring,)))

        return pl.pallas_call(
            kernel,
            out_shape=jax.ShapeDtypeStruct((dp_last, fo_last), jnp.float32),
            grid_spec=pltpu.PrefetchScalarGridSpec(
                num_scalar_prefetch=1,
                grid=(1,),
                in_specs=in_specs,
                out_specs=pl.BlockSpec((dp_last, fo_last),
                                       lambda i, ids_ref: (0, 0)),
                scratch_shapes=scratch,
            ),
            compiler_params=pltpu.CompilerParams(
                dimension_semantics=("arbitrary",),
                vmem_limit_bytes=vmem_limit),
        )(ids, emb_p, *flat_ops)

    if single_buffer:
        try:
            out_p = _build_and_call(True)
        except Exception:   # pipeline_mode=Buffered(1) unsupported -> default
            out_p = _build_and_call(False)
    else:
        out_p = _build_and_call(False)

    n_dst_last = blocks_adj[-1].shape[0]
    return out_p[:n_dst_last, :prepped["n_out"]]


# ----------------------------------------------------------------------------
# Pure-JAX reference + parameter init.
# ----------------------------------------------------------------------------
def sage_forward_ref(params, blocks_adj, input_nodes,
                     match_kernel_precision=False):
    """Reference. With match_kernel_precision=True the matmul operands are
    rounded to bf16 (f32 accumulation), mirroring the kernel's MXU precision."""
    if match_kernel_precision:
        cast = lambda x: x.astype(jnp.bfloat16).astype(jnp.float32)
    else:
        cast = lambda x: x
    dot = functools.partial(jnp.dot, precision=jax.lax.Precision.HIGHEST)

    h = params["emb"][input_nodes]
    n_layers = len(params["layers"])
    for l, (adj, lp) in enumerate(zip(blocks_adj, params["layers"])):
        n_dst = adj.shape[0]
        h_dst = h[:n_dst]
        deg = jnp.sum(adj, axis=-1, keepdims=True)
        neigh = dot(cast(adj), cast(h)) / jnp.maximum(deg, 1.0)
        h = (dot(cast(h_dst), cast(lp["w_self"]))
             + dot(cast(neigh), cast(lp["w_neigh"]))
             + lp["bias"])
        if l != n_layers - 1:
            h = jnp.maximum(h, 0.0)
    return h


def init_params(key, num_nodes, in_feats, n_hidden, n_classes, n_layers):
    keys = jax.random.split(key, 1 + 3 * n_layers)
    params = {"emb": jax.random.normal(keys[0], (num_nodes, in_feats),
                                       jnp.float32)}
    dims = [in_feats] + [n_hidden] * (n_layers - 1) + [n_classes]
    layers = []
    for l in range(n_layers):
        fi, fo = dims[l], dims[l + 1]
        scale = 1.0 / jnp.sqrt(jnp.float32(fi))
        layers.append({
            "w_neigh": scale * jax.random.normal(keys[1 + 3 * l], (fi, fo),
                                                 jnp.float32),
            "w_self": scale * jax.random.normal(keys[2 + 3 * l], (fi, fo),
                                                jnp.float32),
            "bias": 0.1 * jax.random.normal(keys[3 + 3 * l], (1, fo),
                                            jnp.float32),
        })
    params["layers"] = layers
    return params


if __name__ == "__main__":
    key = jax.random.PRNGKey(0)

    # Small, forward-consistent shapes.
    num_nodes = 64      # embedding table size
    in_feats = 32
    n_hidden = 32
    n_classes = 8
    n_layers = 2

    # Sampled subgraph: 16 src nodes, block0 -> 12 dst, block1 -> 4 dst.
    n_src0, n_dst0, n_dst1 = 16, 12, 4

    k_nodes, k_a0, k_a1, k_params = jax.random.split(key, 4)
    input_nodes = jax.random.permutation(k_nodes, num_nodes)[:n_src0].astype(
        jnp.int32)

    # Dense binary adjacency blocks [num_dst, num_src].
    adj0 = (jax.random.uniform(k_a0, (n_dst0, n_src0)) < 0.3).astype(jnp.float32)
    adj1 = (jax.random.uniform(k_a1, (n_dst1, n_dst0)) < 0.3).astype(jnp.float32)
    blocks_adj = (adj0, adj1)

    params = init_params(k_params, num_nodes, in_feats, n_hidden, n_classes,
                         n_layers)
    prepped = prepare_params(params)

    # Primary path: in-VMEM embedding gather, chip-appropriate matmul layout.
    out = sage_forward(prepped, blocks_adj, input_nodes)
    out = jax.block_until_ready(out)
    assert out.shape == (n_dst1, n_classes), out.shape

    # Tight check vs a reference that mirrors the kernel's bf16-operand /
    # f32-accumulate matmul precision (adjacency is binary so bf16 is exact).
    ref_matched = sage_forward_ref(params, blocks_adj, input_nodes,
                                   match_kernel_precision=True)
    assert jnp.allclose(out, ref_matched, atol=2e-2, rtol=2e-2), \
        "mismatch vs precision-matched reference"

    # Looser sanity check vs the full-f32 reference semantics.
    ref_f32 = sage_forward_ref(params, blocks_adj, input_nodes,
                               match_kernel_precision=False)
    assert jnp.allclose(out, ref_f32, atol=1e-1, rtol=1e-1), \
        "mismatch vs f32 reference"

    # Also exercise the HBM-resident-table DMA-ring gather fallback and the
    # alternate output-matmul structure (the one used on the other chip family).
    out_alt = sage_forward(prepped, blocks_adj, input_nodes,
                           force_hbm_table=True,
                           fuse_k=not _mxu_prefers_k256())
    out_alt = jax.block_until_ready(out_alt)
    assert jnp.allclose(out_alt, ref_matched, atol=2e-2, rtol=2e-2), \
        "mismatch (HBM-table / alternate matmul path) vs matched reference"

    print("KERNEL_OK")
</pallas_src>

<mosaic_0001>
module attributes {stable_mosaic.version = 11 : i64} {
  func.func @kernel(%arg0: i32, %arg1: memref<16xi32, #tpu.memory_space<smem>>, %arg2: memref<64x128xf32, #tpu.memory_space<vmem>>, %arg3: memref<128x128xbf16, #tpu.memory_space<vmem>>, %arg4: memref<128x1xf32, #tpu.memory_space<vmem>>, %arg5: memref<256x128xbf16, #tpu.memory_space<vmem>>, %arg6: memref<1x128xf32, #tpu.memory_space<vmem>>, %arg7: memref<16x128xbf16, #tpu.memory_space<vmem>>, %arg8: memref<16x1xf32, #tpu.memory_space<vmem>>, %arg9: memref<256x128xbf16, #tpu.memory_space<vmem>>, %arg10: memref<1x128xf32, #tpu.memory_space<vmem>>, %arg11: memref<16x128xf32, #tpu.memory_space<vmem>>, %arg12: memref<128x128xf32, #tpu.memory_space<vmem>>) attributes {dimension_semantics = [#tpu.dimension_semantics<arbitrary>], iteration_bounds = array<i64: 1>, scalar_prefetch = 1 : i64, scratch_operands = 1 : i64, tpu.core_type = #tpu.core_type<tc>, window_params = [{pipeline_mode = #tpu.pipeline_mode<synchronous>, transform_indices = @transform_0, window_bounds = array<i64: 64, 128>}, {pipeline_mode = #tpu.pipeline_mode<synchronous>, transform_indices = @transform_1, window_bounds = array<i64: 128, 128>}, {pipeline_mode = #tpu.pipeline_mode<synchronous>, transform_indices = @transform_2, window_bounds = array<i64: 128, 1>}, {pipeline_mode = #tpu.pipeline_mode<synchronous>, transform_indices = @transform_3, window_bounds = array<i64: 256, 128>}, {pipeline_mode = #tpu.pipeline_mode<synchronous>, transform_indices = @transform_4, window_bounds = array<i64: 1, 128>}, {pipeline_mode = #tpu.pipeline_mode<synchronous>, transform_indices = @transform_5, window_bounds = array<i64: 16, 128>}, {pipeline_mode = #tpu.pipeline_mode<synchronous>, transform_indices = @transform_6, window_bounds = array<i64: 16, 1>}, {pipeline_mode = #tpu.pipeline_mode<synchronous>, transform_indices = @transform_7, window_bounds = array<i64: 256, 128>}, {pipeline_mode = #tpu.pipeline_mode<synchronous>, transform_indices = @transform_8, window_bounds = array<i64: 1, 128>}, {pipeline_mode = #tpu.pipeline_mode<synchronous>, transform_indices = @transform_9, window_bounds = array<i64: 16, 128>}]} {
    %cst = arith.constant 0.000000e+00 : f32
    %0 = vector.broadcast %cst : f32 to vector<112x128xf32>
    %c16 = arith.constant 16 : index
    %c0 = arith.constant 0 : index
    %1 = vector.load %arg12[%c16, %c0] : memref<128x128xf32, #tpu.memory_space<vmem>>, vector<112x128xf32>
    tpu.vector_store %arg12[%c16, %c0], %0 {strides = array<i32>} : memref<128x128xf32, #tpu.memory_space<vmem>>, vector<112x128xf32>,
    %c0_0 = arith.constant 0 : index
    %2 = memref.load %arg1[%c0_0] : memref<16xi32, #tpu.memory_space<smem>>
    %3 = arith.index_cast %2 : i32 to index
    %c0_1 = arith.constant 0 : index
    %4 = vector.load %arg2[%3, %c0_1] : memref<64x128xf32, #tpu.memory_space<vmem>>, vector<1x128xf32>
    %c0_2 = arith.constant 0 : index
    %c0_3 = arith.constant 0 : index
    %5 = vector.load %arg12[%c0_2, %c0_3] : memref<128x128xf32, #tpu.memory_space<vmem>>, vector<1x128xf32>
    tpu.vector_store %arg12[%c0_2, %c0_3], %4 {strides = array<i32>} : memref<128x128xf32, #tpu.memory_space<vmem>>, vector<1x128xf32>,
    %c1 = arith.constant 1 : index
    %6 = memref.load %arg1[%c1] : memref<16xi32, #tpu.memory_space<smem>>
    %7 = arith.index_cast %6 : i32 to index
    %c0_4 = arith.constant 0 : index
    %8 = vector.load %arg2[%7, %c0_4] : memref<64x128xf32, #tpu.memory_space<vmem>>, vector<1x128xf32>
    %c1_5 = arith.constant 1 : index
    %c0_6 = arith.constant 0 : index
    %9 = vector.load %arg12[%c1_5, %c0_6] : memref<128x128xf32, #tpu.memory_space<vmem>>, vector<1x128xf32>
    tpu.vector_store %arg12[%c1_5, %c0_6], %8 {strides = array<i32>} : memref<128x128xf32, #tpu.memory_space<vmem>>, vector<1x128xf32>,
    %c2 = arith.constant 2 : index
    %10 = memref.load %arg1[%c2] : memref<16xi32, #tpu.memory_space<smem>>
    %11 = arith.index_cast %10 : i32 to index
    %c0_7 = arith.constant 0 : index
    %12 = vector.load %arg2[%11, %c0_7] : memref<64x128xf32, #tpu.memory_space<vmem>>, vector<1x128xf32>
    %c2_8 = arith.constant 2 : index
    %c0_9 = arith.constant 0 : index
    %13 = vector.load %arg12[%c2_8, %c0_9] : memref<128x128xf32, #tpu.memory_space<vmem>>, vector<1x128xf32>
    tpu.vector_store %arg12[%c2_8, %c0_9], %12 {strides = array<i32>} : memref<128x128xf32, #tpu.memory_space<vmem>>, vector<1x128xf32>,
    %c3 = arith.constant 3 : index
    %14 = memref.load %arg1[%c3] : memref<16xi32, #tpu.memory_space<smem>>
    %15 = arith.index_cast %14 : i32 to index
    %c0_10 = arith.constant 0 : index
    %16 = vector.load %arg2[%15, %c0_10] : memref<64x128xf32, #tpu.memory_space<vmem>>, vector<1x128xf32>
    %c3_11 = arith.constant 3 : index
    %c0_12 = arith.constant 0 : index
    %17 = vector.load %arg12[%c3_11, %c0_12] : memref<128x128xf32, #tpu.memory_space<vmem>>, vector<1x128xf32>
    tpu.vector_store %arg12[%c3_11, %c0_12], %16 {strides = array<i32>} : memref<128x128xf32, #tpu.memory_space<vmem>>, vector<1x128xf32>,
    %c4 = arith.constant 4 : index
    %18 = memref.load %arg1[%c4] : memref<16xi32, #tpu.memory_space<smem>>
    %19 = arith.index_cast %18 : i32 to index
    %c0_13 = arith.constant 0 : index
    %20 = vector.load %arg2[%19, %c0_13] : memref<64x128xf32, #tpu.memory_space<vmem>>, vector<1x128xf32>
    %c4_14 = arith.constant 4 : index
    %c0_15 = arith.constant 0 : index
    %21 = vector.load %arg12[%c4_14, %c0_15] : memref<128x128xf32, #tpu.memory_space<vmem>>, vector<1x128xf32>
    tpu.vector_store %arg12[%c4_14, %c0_15], %20 {strides = array<i32>} : memref<128x128xf32, #tpu.memory_space<vmem>>, vector<1x128xf32>,
    %c5 = arith.constant 5 : index
    %22 = memref.load %arg1[%c5] : memref<16xi32, #tpu.memory_space<smem>>
    %23 = arith.index_cast %22 : i32 to index
    %c0_16 = arith.constant 0 : index
    %24 = vector.load %arg2[%23, %c0_16] : memref<64x128xf32, #tpu.memory_space<vmem>>, vector<1x128xf32>
    %c5_17 = arith.constant 5 : index
    %c0_18 = arith.constant 0 : index
    %25 = vector.load %arg12[%c5_17, %c0_18] : memref<128x128xf32, #tpu.memory_space<vmem>>, vector<1x128xf32>
    tpu.vector_store %arg12[%c5_17, %c0_18], %24 {strides = array<i32>} : memref<128x128xf32, #tpu.memory_space<vmem>>, vector<1x128xf32>,
    %c6 = arith.constant 6 : index
    %26 = memref.load %arg1[%c6] : memref<16xi32, #tpu.memory_space<smem>>
    %27 = arith.index_cast %26 : i32 to index
    %c0_19 = arith.constant 0 : index
    %28 = vector.load %arg2[%27, %c0_19] : memref<64x128xf32, #tpu.memory_space<vmem>>, vector<1x128xf32>
    %c6_20 = arith.constant 6 : index
    %c0_21 = arith.constant 0 : index
    %29 = vector.load %arg12[%c6_20, %c0_21] : memref<128x128xf32, #tpu.memory_space<vmem>>, vector<1x128xf32>
    tpu.vector_store %arg12[%c6_20, %c0_21], %28 {strides = array<i32>} : memref<128x128xf32, #tpu.memory_space<vmem>>, vector<1x128xf32>,
    %c7 = arith.constant 7 : index
    %30 = memref.load %arg1[%c7] : memref<16xi32, #tpu.memory_space<smem>>
    %31 = arith.index_cast %30 : i32 to index
    %c0_22 = arith.constant 0 : index
    %32 = vector.load %arg2[%31, %c0_22] : memref<64x128xf32, #tpu.memory_space<vmem>>, vector<1x128xf32>
    %c7_23 = arith.constant 7 : index
    %c0_24 = arith.constant 0 : index
    %33 = vector.load %arg12[%c7_23, %c0_24] : memref<128x128xf32, #tpu.memory_space<vmem>>, vector<1x128xf32>
    tpu.vector_store %arg12[%c7_23, %c0_24], %32 {strides = array<i32>} : memref<128x128xf32, #tpu.memory_space<vmem>>, vector<1x128xf32>,
    %c8 = arith.constant 8 : index
    %34 = memref.load %arg1[%c8] : memref<16xi32, #tpu.memory_space<smem>>
    %35 = arith.index_cast %34 : i32 to index
    %c0_25 = arith.constant 0 : index
    %36 = vector.load %arg2[%35, %c0_25] : memref<64x128xf32, #tpu.memory_space<vmem>>, vector<1x128xf32>
    %c8_26 = arith.constant 8 : index
    %c0_27 = arith.constant 0 : index
    %37 = vector.load %arg12[%c8_26, %c0_27] : memref<128x128xf32, #tpu.memory_space<vmem>>, vector<1x128xf32>
    tpu.vector_store %arg12[%c8_26, %c0_27], %36 {strides = array<i32>} : memref<128x128xf32, #tpu.memory_space<vmem>>, vector<1x128xf32>,
    %c9 = arith.constant 9 : index
    %38 = memref.load %arg1[%c9] : memref<16xi32, #tpu.memory_space<smem>>
    %39 = arith.index_cast %38 : i32 to index
    %c0_28 = arith.constant 0 : index
    %40 = vector.load %arg2[%39, %c0_28] : memref<64x128xf32, #tpu.memory_space<vmem>>, vector<1x128xf32>
    %c9_29 = arith.constant 9 : index
    %c0_30 = arith.constant 0 : index
    %41 = vector.load %arg12[%c9_29, %c0_30] : memref<128x128xf32, #tpu.memory_space<vmem>>, vector<1x128xf32>
    tpu.vector_store %arg12[%c9_29, %c0_30], %40 {strides = array<i32>} : memref<128x128xf32, #tpu.memory_space<vmem>>, vector<1x128xf32>,
    %c10 = arith.constant 10 : index
    %42 = memref.load %arg1[%c10] : memref<16xi32, #tpu.memory_space<smem>>
    %43 = arith.index_cast %42 : i32 to index
    %c0_31 = arith.constant 0 : index
    %44 = vector.load %arg2[%43, %c0_31] : memref<64x128xf32, #tpu.memory_space<vmem>>, vector<1x128xf32>
    %c10_32 = arith.constant 10 : index
    %c0_33 = arith.constant 0 : index
    %45 = vector.load %arg12[%c10_32, %c0_33] : memref<128x128xf32, #tpu.memory_space<vmem>>, vector<1x128xf32>
    tpu.vector_store %arg12[%c10_32, %c0_33], %44 {strides = array<i32>} : memref<128x128xf32, #tpu.memory_space<vmem>>, vector<1x128xf32>,
    %c11 = arith.constant 11 : index
    %46 = memref.load %arg1[%c11] : memref<16xi32, #tpu.memory_space<smem>>
    %47 = arith.index_cast %46 : i32 to index
    %c0_34 = arith.constant 0 : index
    %48 = vector.load %arg2[%47, %c0_34] : memref<64x128xf32, #tpu.memory_space<vmem>>, vector<1x128xf32>
    %c11_35 = arith.constant 11 : index
    %c0_36 = arith.constant 0 : index
    %49 = vector.load %arg12[%c11_35, %c0_36] : memref<128x128xf32, #tpu.memory_space<vmem>>, vector<1x128xf32>
    tpu.vector_store %arg12[%c11_35, %c0_36], %48 {strides = array<i32>} : memref<128x128xf32, #tpu.memory_space<vmem>>, vector<1x128xf32>,
    %c12 = arith.constant 12 : index
    %50 = memref.load %arg1[%c12] : memref<16xi32, #tpu.memory_space<smem>>
    %51 = arith.index_cast %50 : i32 to index
    %c0_37 = arith.constant 0 : index
    %52 = vector.load %arg2[%51, %c0_37] : memref<64x128xf32, #tpu.memory_space<vmem>>, vector<1x128xf32>
    %c12_38 = arith.constant 12 : index
    %c0_39 = arith.constant 0 : index
    %53 = vector.load %arg12[%c12_38, %c0_39] : memref<128x128xf32, #tpu.memory_space<vmem>>, vector<1x128xf32>
    tpu.vector_store %arg12[%c12_38, %c0_39], %52 {strides = array<i32>} : memref<128x128xf32, #tpu.memory_space<vmem>>, vector<1x128xf32>,
    %c13 = arith.constant 13 : index
    %54 = memref.load %arg1[%c13] : memref<16xi32, #tpu.memory_space<smem>>
    %55 = arith.index_cast %54 : i32 to index
    %c0_40 = arith.constant 0 : index
    %56 = vector.load %arg2[%55, %c0_40] : memref<64x128xf32, #tpu.memory_space<vmem>>, vector<1x128xf32>
    %c13_41 = arith.constant 13 : index
    %c0_42 = arith.constant 0 : index
    %57 = vector.load %arg12[%c13_41, %c0_42] : memref<128x128xf32, #tpu.memory_space<vmem>>, vector<1x128xf32>
    tpu.vector_store %arg12[%c13_41, %c0_42], %56 {strides = array<i32>} : memref<128x128xf32, #tpu.memory_space<vmem>>, vector<1x128xf32>,
    %c14 = arith.constant 14 : index
    %58 = memref.load %arg1[%c14] : memref<16xi32, #tpu.memory_space<smem>>
    %59 = arith.index_cast %58 : i32 to index
    %c0_43 = arith.constant 0 : index
    %60 = vector.load %arg2[%59, %c0_43] : memref<64x128xf32, #tpu.memory_space<vmem>>, vector<1x128xf32>
    %c14_44 = arith.constant 14 : index
    %c0_45 = arith.constant 0 : index
    %61 = vector.load %arg12[%c14_44, %c0_45] : memref<128x128xf32, #tpu.memory_space<vmem>>, vector<1x128xf32>
    tpu.vector_store %arg12[%c14_44, %c0_45], %60 {strides = array<i32>} : memref<128x128xf32, #tpu.memory_space<vmem>>, vector<1x128xf32>,
    %c15 = arith.constant 15 : index
    %62 = memref.load %arg1[%c15] : memref<16xi32, #tpu.memory_space<smem>>
    %63 = arith.index_cast %62 : i32 to index
    %c0_46 = arith.constant 0 : index
    %64 = vector.load %arg2[%63, %c0_46] : memref<64x128xf32, #tpu.memory_space<vmem>>, vector<1x128xf32>
    %c15_47 = arith.constant 15 : index
    %c0_48 = arith.constant 0 : index
    %65 = vector.load %arg12[%c15_47, %c0_48] : memref<128x128xf32, #tpu.memory_space<vmem>>, vector<1x128xf32>
    tpu.vector_store %arg12[%c15_47, %c0_48], %64 {strides = array<i32>} : memref<128x128xf32, #tpu.memory_space<vmem>>, vector<1x128xf32>,
    %c0_49 = arith.constant 0 : index
    %c0_50 = arith.constant 0 : index
    %66 = vector.load %arg12[%c0_49, %c0_50] : memref<128x128xf32, #tpu.memory_space<vmem>>, vector<128x128xf32>
    %67 = arith.truncf %66 : vector<128x128xf32> to vector<128x128xbf16>
    %c0_51 = arith.constant 0 : index
    %c0_52 = arith.constant 0 : index
    %68 = vector.load %arg3[%c0_51, %c0_52] : memref<128x128xbf16, #tpu.memory_space<vmem>>, vector<128x128xbf16>
    %cst_53 = arith.constant dense<0.000000e+00> : vector<128x128xf32>
    %69 = tpu.matmul %68, %67, %cst_53 {dimension_numbers = #tpu.dot_dimension_numbers<[1], [0], [0], [1], [0, 0, 1, 1], [], []>} : vector<128x128xbf16>, vector<128x128xbf16>, vector<128x128xf32> -> vector<128x128xf32>
    %c0_54 = arith.constant 0 : index
    %c0_55 = arith.constant 0 : index
    %70 = vector.load %arg4[%c0_54, %c0_55] : memref<128x1xf32, #tpu.memory_space<vmem>>, vector<128x1xf32>
    %71 = vector.broadcast %70 : vector<128x1xf32> to vector<128x128xf32>
    %72 = arith.mulf %69, %71 : vector<128x128xf32>
    %73 = arith.truncf %72 : vector<128x128xf32> to vector<128x128xbf16>
    %74 = tpu.concatenate %67, %73 in 1 : vector<128x128xbf16>, vector<128x128xbf16> -> vector<128x256xbf16>
    %c0_56 = arith.constant 0 : index
    %c0_57 = arith.constant 0 : index
    %75 = vector.load %arg5[%c0_56, %c0_57] : memref<256x128xbf16, #tpu.memory_space<vmem>>, vector<256x128xbf16>
    %cst_58 = arith.constant dense<0.000000e+00> : vector<128x128xf32>
    %76 = tpu.matmul %74, %75, %cst_58 {dimension_numbers = #tpu.dot_dimension_numbers<[1], [0], [0], [1], [0, 0, 1, 1], [], []>} : vector<128x256xbf16>, vector<256x128xbf16>, vector<128x128xf32> -> vector<128x128xf32>
    %c0_59 = arith.constant 0 : index
    %c0_60 = arith.constant 0 : index
    %77 = vector.load %arg6[%c0_59, %c0_60] : memref<1x128xf32, #tpu.memory_space<vmem>>, vector<1x128xf32>
    %78 = vector.broadcast %77 : vector<1x128xf32> to vector<128x128xf32>
    %79 = arith.addf %76, %78 : vector<128x128xf32>
    %cst_61 = arith.constant 0.000000e+00 : f32
    %80 = vector.broadcast %cst_61 : f32 to vector<128x128xf32>
    %81 = arith.maximumf %79, %80 : vector<128x128xf32>
    %82 = arith.truncf %81 : vector<128x128xf32> to vector<128x128xbf16>
    %c0_62 = arith.constant 0 : index
    %c0_63 = arith.constant 0 : index
    %83 = vector.load %arg7[%c0_62, %c0_63] : memref<16x128xbf16, #tpu.memory_space<vmem>>, vector<16x128xbf16>
    %cst_64 = arith.constant dense<0.000000e+00> : vector<16x128xf32>
    %84 = tpu.matmul %83, %82, %cst_64 {dimension_numbers = #tpu.dot_dimension_numbers<[1], [0], [0], [1], [0, 0, 1, 1], [], []>} : vector<16x128xbf16>, vector<128x128xbf16>, vector<16x128xf32> -> vector<16x128xf32>
    %c0_65 = arith.constant 0 : index
    %c0_66 = arith.constant 0 : index
    %85 = vector.load %arg8[%c0_65, %c0_66] : memref<16x1xf32, #tpu.memory_space<vmem>>, vector<16x1xf32>
    %86 = vector.broadcast %85 : vector<16x1xf32> to vector<16x128xf32>
    %87 = arith.mulf %84, %86 : vector<16x128xf32>
    %88 = arith.truncf %87 : vector<16x128xf32> to vector<16x128xbf16>
    %89 = vector.extract_strided_slice %82 {offsets = [0, 0], sizes = [16, 128], strides = [1, 1]} : vector<128x128xbf16> to vector<16x128xbf16>
    %90 = tpu.concatenate %89, %88 in 1 : vector<16x128xbf16>, vector<16x128xbf16> -> vector<16x256xbf16>
    %c0_67 = arith.constant 0 : index
    %c0_68 = arith.constant 0 : index
    %91 = vector.load %arg9[%c0_67, %c0_68] : memref<256x128xbf16, #tpu.memory_space<vmem>>, vector<256x128xbf16>
    %cst_69 = arith.constant dense<0.000000e+00> : vector<16x128xf32>
    %92 = tpu.matmul %90, %91, %cst_69 {dimension_numbers = #tpu.dot_dimension_numbers<[1], [0], [0], [1], [0, 0, 1, 1], [], []>} : vector<16x256xbf16>, vector<256x128xbf16>, vector<16x128xf32> -> vector<16x128xf32>
    %c0_70 = arith.constant 0 : index
    %c0_71 = arith.constant 0 : index
    %93 = vector.load %arg10[%c0_70, %c0_71] : memref<1x128xf32, #tpu.memory_space<vmem>>, vector<1x128xf32>
    %94 = vector.broadcast %93 : vector<1x128xf32> to vector<16x128xf32>
    %95 = arith.addf %92, %94 : vector<16x128xf32>
    %c0_72 = arith.constant 0 : index
    %c0_73 = arith.constant 0 : index
    %96 = vector.load %arg11[%c0_72, %c0_73] : memref<16x128xf32, #tpu.memory_space<vmem>>, vector<16x128xf32>
    tpu.vector_store %arg11[%c0_72, %c0_73], %95 {strides = array<i32>} : memref<16x128xf32, #tpu.memory_space<vmem>>, vector<16x128xf32>,
    return
  }
  func.func @transform_0(%arg0: i32, %arg1: memref<16xi32, #tpu.memory_space<smem>>) -> (i32, i32) {
    %c0_i32 = arith.constant 0 : i32
    %c0_i32_0 = arith.constant 0 : i32
    %c0_i32_1 = arith.constant 0 : i32
    return %c0_i32, %c0_i32_0 : i32, i32
  }
  func.func @transform_1(%arg0: i32, %arg1: memref<16xi32, #tpu.memory_space<smem>>) -> (i32, i32) {
    %c0_i32 = arith.constant 0 : i32
    %c0_i32_0 = arith.constant 0 : i32
    %c0_i32_1 = arith.constant 0 : i32
    return %c0_i32, %c0_i32_0 : i32, i32
  }
  func.func @transform_2(%arg0: i32, %arg1: memref<16xi32, #tpu.memory_space<smem>>) -> (i32, i32) {
    %c0_i32 = arith.constant 0 : i32
    %c0_i32_0 = arith.constant 0 : i32
    %c0_i32_1 = arith.constant 0 : i32
    return %c0_i32, %c0_i32_0 : i32, i32
  }
  func.func @transform_3(%arg0: i32, %arg1: memref<16xi32, #tpu.memory_space<smem>>) -> (i32, i32) {
    %c0_i32 = arith.constant 0 : i32
    %c0_i32_0 = arith.constant 0 : i32
    %c0_i32_1 = arith.constant 0 : i32
    return %c0_i32, %c0_i32_0 : i32, i32
  }
  func.func @transform_4(%arg0: i32, %arg1: memref<16xi32, #tpu.memory_space<smem>>) -> (i32, i32) {
    %c0_i32 = arith.constant 0 : i32
    %c0_i32_0 = arith.constant 0 : i32
    %c0_i32_1 = arith.constant 0 : i32
    return %c0_i32, %c0_i32_0 : i32, i32
  }
  func.func @transform_5(%arg0: i32, %arg1: memref<16xi32, #tpu.memory_space<smem>>) -> (i32, i32) {
    %c0_i32 = arith.constant 0 : i32
    %c0_i32_0 = arith.constant 0 : i32
    %c0_i32_1 = arith.constant 0 : i32
    return %c0_i32, %c0_i32_0 : i32, i32
  }
  func.func @transform_6(%arg0: i32, %arg1: memref<16xi32, #tpu.memory_space<smem>>) -> (i32, i32) {
    %c0_i32 = arith.constant 0 : i32
    %c0_i32_0 = arith.constant 0 : i32
    %c0_i32_1 = arith.constant 0 : i32
    return %c0_i32, %c0_i32_0 : i32, i32
  }
  func.func @transform_7(%arg0: i32, %arg1: memref<16xi32, #tpu.memory_space<smem>>) -> (i32, i32) {
    %c0_i32 = arith.constant 0 : i32
    %c0_i32_0 = arith.constant 0 : i32
    %c0_i32_1 = arith.constant 0 : i32
    return %c0_i32, %c0_i32_0 : i32, i32
  }
  func.func @transform_8(%arg0: i32, %arg1: memref<16xi32, #tpu.memory_space<smem>>) -> (i32, i32) {
    %c0_i32 = arith.constant 0 : i32
    %c0_i32_0 = arith.constant 0 : i32
    %c0_i32_1 = arith.constant 0 : i32
    return %c0_i32, %c0_i32_0 : i32, i32
  }
  func.func @transform_9(%arg0: i32, %arg1: memref<16xi32, #tpu.memory_space<smem>>) -> (i32, i32) {
    %c0_i32 = arith.constant 0 : i32
    %c0_i32_0 = arith.constant 0 : i32
    %c0_i32_1 = arith.constant 0 : i32
    return %c0_i32, %c0_i32_0 : i32, i32
  }
}

module attributes {stable_mosaic.version = 11 : i64} {
  func.func @kernel(%arg0: i32, %arg1: memref<16xi32, #tpu.memory_space<smem>>, %arg2: memref<64x128xf32, #tpu.memory_space<vmem>>, %arg3: memref<128x128xbf16, #tpu.memory_space<vmem>>, %arg4: memref<128x1xf32, #tpu.memory_space<vmem>>, %arg5: memref<256x128xbf16, #tpu.memory_space<vmem>>, %arg6: memref<1x128xf32, #tpu.memory_space<vmem>>, %arg7: memref<16x128xbf16, #tpu.memory_space<vmem>>, %arg8: memref<16x1xf32, #tpu.memory_space<vmem>>, %arg9: memref<256x128xbf16, #tpu.memory_space<vmem>>, %arg10: memref<1x128xf32, #tpu.memory_space<vmem>>, %arg11: memref<16x128xf32, #tpu.memory_space<vmem>>, %arg12: memref<128x128xf32, #tpu.memory_space<vmem>>) attributes {dimension_semantics = [#tpu.dimension_semantics<arbitrary>], iteration_bounds = array<i64: 1>, scalar_prefetch = 1 : i64, scratch_operands = 1 : i64, tpu.core_type = #tpu.core_type<tc>, window_params = [{pipeline_mode = #tpu.pipeline_mode<synchronous>, transform_indices = @transform_0, window_bounds = array<i64: 64, 128>}, {pipeline_mode = #tpu.pipeline_mode<synchronous>, transform_indices = @transform_1, window_bounds = array<i64: 128, 128>}, {pipeline_mode = #tpu.pipeline_mode<synchronous>, transform_indices = @transform_2, window_bounds = array<i64: 128, 1>}, {pipeline_mode = #tpu.pipeline_mode<synchronous>, transform_indices = @transform_3, window_bounds = array<i64: 256, 128>}, {pipeline_mode = #tpu.pipeline_mode<synchronous>, transform_indices = @transform_4, window_bounds = array<i64: 1, 128>}, {pipeline_mode = #tpu.pipeline_mode<synchronous>, transform_indices = @transform_5, window_bounds = array<i64: 16, 128>}, {pipeline_mode = #tpu.pipeline_mode<synchronous>, transform_indices = @transform_6, window_bounds = array<i64: 16, 1>}, {pipeline_mode = #tpu.pipeline_mode<synchronous>, transform_indices = @transform_7, window_bounds = array<i64: 256, 128>}, {pipeline_mode = #tpu.pipeline_mode<synchronous>, transform_indices = @transform_8, window_bounds = array<i64: 1, 128>}, {pipeline_mode = #tpu.pipeline_mode<synchronous>, transform_indices = @transform_9, window_bounds = array<i64: 16, 128>}]} {
    %cst = arith.constant 0.000000e+00 : f32
    %0 = vector.broadcast %cst : f32 to vector<112x128xf32>
    %c16 = arith.constant 16 : index
    %c0 = arith.constant 0 : index
    %1 = vector.load %arg12[%c16, %c0] : memref<128x128xf32, #tpu.memory_space<vmem>>, vector<112x128xf32>
    tpu.vector_store %arg12[%c16, %c0], %0 {strides = array<i32>} : memref<128x128xf32, #tpu.memory_space<vmem>>, vector<112x128xf32>,
    %c0_0 = arith.constant 0 : index
    %2 = memref.load %arg1[%c0_0] : memref<16xi32, #tpu.memory_space<smem>>
    %3 = arith.index_cast %2 : i32 to index
    %c0_1 = arith.constant 0 : index
    %4 = vector.load %arg2[%3, %c0_1] : memref<64x128xf32, #tpu.memory_space<vmem>>, vector<1x128xf32>
    %c0_2 = arith.constant 0 : index
    %c0_3 = arith.constant 0 : index
    %5 = vector.load %arg12[%c0_2, %c0_3] : memref<128x128xf32, #tpu.memory_space<vmem>>, vector<1x128xf32>
    tpu.vector_store %arg12[%c0_2, %c0_3], %4 {strides = array<i32>} : memref<128x128xf32, #tpu.memory_space<vmem>>, vector<1x128xf32>,
    %c1 = arith.constant 1 : index
    %6 = memref.load %arg1[%c1] : memref<16xi32, #tpu.memory_space<smem>>
    %7 = arith.index_cast %6 : i32 to index
    %c0_4 = arith.constant 0 : index
    %8 = vector.load %arg2[%7, %c0_4] : memref<64x128xf32, #tpu.memory_space<vmem>>, vector<1x128xf32>
    %c1_5 = arith.constant 1 : index
    %c0_6 = arith.constant 0 : index
    %9 = vector.load %arg12[%c1_5, %c0_6] : memref<128x128xf32, #tpu.memory_space<vmem>>, vector<1x128xf32>
    tpu.vector_store %arg12[%c1_5, %c0_6], %8 {strides = array<i32>} : memref<128x128xf32, #tpu.memory_space<vmem>>, vector<1x128xf32>,
    %c2 = arith.constant 2 : index
    %10 = memref.load %arg1[%c2] : memref<16xi32, #tpu.memory_space<smem>>
    %11 = arith.index_cast %10 : i32 to index
    %c0_7 = arith.constant 0 : index
    %12 = vector.load %arg2[%11, %c0_7] : memref<64x128xf32, #tpu.memory_space<vmem>>, vector<1x128xf32>
    %c2_8 = arith.constant 2 : index
    %c0_9 = arith.constant 0 : index
    %13 = vector.load %arg12[%c2_8, %c0_9] : memref<128x128xf32, #tpu.memory_space<vmem>>, vector<1x128xf32>
    tpu.vector_store %arg12[%c2_8, %c0_9], %12 {strides = array<i32>} : memref<128x128xf32, #tpu.memory_space<vmem>>, vector<1x128xf32>,
    %c3 = arith.constant 3 : index
    %14 = memref.load %arg1[%c3] : memref<16xi32, #tpu.memory_space<smem>>
    %15 = arith.index_cast %14 : i32 to index
    %c0_10 = arith.constant 0 : index
    %16 = vector.load %arg2[%15, %c0_10] : memref<64x128xf32, #tpu.memory_space<vmem>>, vector<1x128xf32>
    %c3_11 = arith.constant 3 : index
    %c0_12 = arith.constant 0 : index
    %17 = vector.load %arg12[%c3_11, %c0_12] : memref<128x128xf32, #tpu.memory_space<vmem>>, vector<1x128xf32>
    tpu.vector_store %arg12[%c3_11, %c0_12], %16 {strides = array<i32>} : memref<128x128xf32, #tpu.memory_space<vmem>>, vector<1x128xf32>,
    %c4 = arith.constant 4 : index
    %18 = memref.load %arg1[%c4] : memref<16xi32, #tpu.memory_space<smem>>
    %19 = arith.index_cast %18 : i32 to index
    %c0_13 = arith.constant 0 : index
    %20 = vector.load %arg2[%19, %c0_13] : memref<64x128xf32, #tpu.memory_space<vmem>>, vector<1x128xf32>
    %c4_14 = arith.constant 4 : index
    %c0_15 = arith.constant 0 : index
    %21 = vector.load %arg12[%c4_14, %c0_15] : memref<128x128xf32, #tpu.memory_space<vmem>>, vector<1x128xf32>
    tpu.vector_store %arg12[%c4_14, %c0_15], %20 {strides = array<i32>} : memref<128x128xf32, #tpu.memory_space<vmem>>, vector<1x128xf32>,
    %c5 = arith.constant 5 : index
    %22 = memref.load %arg1[%c5] : memref<16xi32, #tpu.memory_space<smem>>
    %23 = arith.index_cast %22 : i32 to index
    %c0_16 = arith.constant 0 : index
    %24 = vector.load %arg2[%23, %c0_16] : memref<64x128xf32, #tpu.memory_space<vmem>>, vector<1x128xf32>
    %c5_17 = arith.constant 5 : index
    %c0_18 = arith.constant 0 : index
    %25 = vector.load %arg12[%c5_17, %c0_18] : memref<128x128xf32, #tpu.memory_space<vmem>>, vector<1x128xf32>
    tpu.vector_store %arg12[%c5_17, %c0_18], %24 {strides = array<i32>} : memref<128x128xf32, #tpu.memory_space<vmem>>, vector<1x128xf32>,
    %c6 = arith.constant 6 : index
    %26 = memref.load %arg1[%c6] : memref<16xi32, #tpu.memory_space<smem>>
    %27 = arith.index_cast %26 : i32 to index
    %c0_19 = arith.constant 0 : index
    %28 = vector.load %arg2[%27, %c0_19] : memref<64x128xf32, #tpu.memory_space<vmem>>, vector<1x128xf32>
    %c6_20 = arith.constant 6 : index
    %c0_21 = arith.constant 0 : index
    %29 = vector.load %arg12[%c6_20, %c0_21] : memref<128x128xf32, #tpu.memory_space<vmem>>, vector<1x128xf32>
    tpu.vector_store %arg12[%c6_20, %c0_21], %28 {strides = array<i32>} : memref<128x128xf32, #tpu.memory_space<vmem>>, vector<1x128xf32>,
    %c7 = arith.constant 7 : index
    %30 = memref.load %arg1[%c7] : memref<16xi32, #tpu.memory_space<smem>>
    %31 = arith.index_cast %30 : i32 to index
    %c0_22 = arith.constant 0 : index
    %32 = vector.load %arg2[%31, %c0_22] : memref<64x128xf32, #tpu.memory_space<vmem>>, vector<1x128xf32>
    %c7_23 = arith.constant 7 : index
    %c0_24 = arith.constant 0 : index
    %33 = vector.load %arg12[%c7_23, %c0_24] : memref<128x128xf32, #tpu.memory_space<vmem>>, vector<1x128xf32>
    tpu.vector_store %arg12[%c7_23, %c0_24], %32 {strides = array<i32>} : memref<128x128xf32, #tpu.memory_space<vmem>>, vector<1x128xf32>,
    %c8 = arith.constant 8 : index
    %34 = memref.load %arg1[%c8] : memref<16xi32, #tpu.memory_space<smem>>
    %35 = arith.index_cast %34 : i32 to index
    %c0_25 = arith.constant 0 : index
    %36 = vector.load %arg2[%35, %c0_25] : memref<64x128xf32, #tpu.memory_space<vmem>>, vector<1x128xf32>
    %c8_26 = arith.constant 8 : index
    %c0_27 = arith.constant 0 : index
    %37 = vector.load %arg12[%c8_26, %c0_27] : memref<128x128xf32, #tpu.memory_space<vmem>>, vector<1x128xf32>
    tpu.vector_store %arg12[%c8_26, %c0_27], %36 {strides = array<i32>} : memref<128x128xf32, #tpu.memory_space<vmem>>, vector<1x128xf32>,
    %c9 = arith.constant 9 : index
    %38 = memref.load %arg1[%c9] : memref<16xi32, #tpu.memory_space<smem>>
    %39 = arith.index_cast %38 : i32 to index
    %c0_28 = arith.constant 0 : index
    %40 = vector.load %arg2[%39, %c0_28] : memref<64x128xf32, #tpu.memory_space<vmem>>, vector<1x128xf32>
    %c9_29 = arith.constant 9 : index
    %c0_30 = arith.constant 0 : index
    %41 = vector.load %arg12[%c9_29, %c0_30] : memref<128x128xf32, #tpu.memory_space<vmem>>, vector<1x128xf32>
    tpu.vector_store %arg12[%c9_29, %c0_30], %40 {strides = array<i32>} : memref<128x128xf32, #tpu.memory_space<vmem>>, vector<1x128xf32>,
    %c10 = arith.constant 10 : index
    %42 = memref.load %arg1[%c10] : memref<16xi32, #tpu.memory_space<smem>>
    %43 = arith.index_cast %42 : i32 to index
    %c0_31 = arith.constant 0 : index
    %44 = vector.load %arg2[%43, %c0_31] : memref<64x128xf32, #tpu.memory_space<vmem>>, vector<1x128xf32>
    %c10_32 = arith.constant 10 : index
    %c0_33 = arith.constant 0 : index
    %45 = vector.load %arg12[%c10_32, %c0_33] : memref<128x128xf32, #tpu.memory_space<vmem>>, vector<1x128xf32>
    tpu.vector_store %arg12[%c10_32, %c0_33], %44 {strides = array<i32>} : memref<128x128xf32, #tpu.memory_space<vmem>>, vector<1x128xf32>,
    %c11 = arith.constant 11 : index
    %46 = memref.load %arg1[%c11] : memref<16xi32, #tpu.memory_space<smem>>
    %47 = arith.index_cast %46 : i32 to index
    %c0_34 = arith.constant 0 : index
    %48 = vector.load %arg2[%47, %c0_34] : memref<64x128xf32, #tpu.memory_space<vmem>>, vector<1x128xf32>
    %c11_35 = arith.constant 11 : index
    %c0_36 = arith.constant 0 : index
    %49 = vector.load %arg12[%c11_35, %c0_36] : memref<128x128xf32, #tpu.memory_space<vmem>>, vector<1x128xf32>
    tpu.vector_store %arg12[%c11_35, %c0_36], %48 {strides = array<i32>} : memref<128x128xf32, #tpu.memory_space<vmem>>, vector<1x128xf32>,
    %c12 = arith.constant 12 : index
    %50 = memref.load %arg1[%c12] : memref<16xi32, #tpu.memory_space<smem>>
    %51 = arith.index_cast %50 : i32 to index
    %c0_37 = arith.constant 0 : index
    %52 = vector.load %arg2[%51, %c0_37] : memref<64x128xf32, #tpu.memory_space<vmem>>, vector<1x128xf32>
    %c12_38 = arith.constant 12 : index
    %c0_39 = arith.constant 0 : index
    %53 = vector.load %arg12[%c12_38, %c0_39] : memref<128x128xf32, #tpu.memory_space<vmem>>, vector<1x128xf32>
    tpu.vector_store %arg12[%c12_38, %c0_39], %52 {strides = array<i32>} : memref<128x128xf32, #tpu.memory_space<vmem>>, vector<1x128xf32>,
    %c13 = arith.constant 13 : index
    %54 = memref.load %arg1[%c13] : memref<16xi32, #tpu.memory_space<smem>>
    %55 = arith.index_cast %54 : i32 to index
    %c0_40 = arith.constant 0 : index
    %56 = vector.load %arg2[%55, %c0_40] : memref<64x128xf32, #tpu.memory_space<vmem>>, vector<1x128xf32>
    %c13_41 = arith.constant 13 : index
    %c0_42 = arith.constant 0 : index
    %57 = vector.load %arg12[%c13_41, %c0_42] : memref<128x128xf32, #tpu.memory_space<vmem>>, vector<1x128xf32>
    tpu.vector_store %arg12[%c13_41, %c0_42], %56 {strides = array<i32>} : memref<128x128xf32, #tpu.memory_space<vmem>>, vector<1x128xf32>,
    %c14 = arith.constant 14 : index
    %58 = memref.load %arg1[%c14] : memref<16xi32, #tpu.memory_space<smem>>
    %59 = arith.index_cast %58 : i32 to index
    %c0_43 = arith.constant 0 : index
    %60 = vector.load %arg2[%59, %c0_43] : memref<64x128xf32, #tpu.memory_space<vmem>>, vector<1x128xf32>
    %c14_44 = arith.constant 14 : index
    %c0_45 = arith.constant 0 : index
    %61 = vector.load %arg12[%c14_44, %c0_45] : memref<128x128xf32, #tpu.memory_space<vmem>>, vector<1x128xf32>
    tpu.vector_store %arg12[%c14_44, %c0_45], %60 {strides = array<i32>} : memref<128x128xf32, #tpu.memory_space<vmem>>, vector<1x128xf32>,
    %c15 = arith.constant 15 : index
    %62 = memref.load %arg1[%c15] : memref<16xi32, #tpu.memory_space<smem>>
    %63 = arith.index_cast %62 : i32 to index
    %c0_46 = arith.constant 0 : index
    %64 = vector.load %arg2[%63, %c0_46] : memref<64x128xf32, #tpu.memory_space<vmem>>, vector<1x128xf32>
    %c15_47 = arith.constant 15 : index
    %c0_48 = arith.constant 0 : index
    %65 = vector.load %arg12[%c15_47, %c0_48] : memref<128x128xf32, #tpu.memory_space<vmem>>, vector<1x128xf32>
    tpu.vector_store %arg12[%c15_47, %c0_48], %64 {strides = array<i32>} : memref<128x128xf32, #tpu.memory_space<vmem>>, vector<1x128xf32>,
    %c0_49 = arith.constant 0 : index
    %c0_50 = arith.constant 0 : index
    %66 = vector.load %arg12[%c0_49, %c0_50] : memref<128x128xf32, #tpu.memory_space<vmem>>, vector<128x128xf32>
    %67 = arith.truncf %66 : vector<128x128xf32> to vector<128x128xbf16>
    %c0_51 = arith.constant 0 : index
    %c0_52 = arith.constant 0 : index
    %68 = vector.load %arg3[%c0_51, %c0_52] : memref<128x128xbf16, #tpu.memory_space<vmem>>, vector<128x128xbf16>
    %cst_53 = arith.constant dense<0.000000e+00> : vector<128x128xf32>
    %69 = tpu.matmul %68, %67, %cst_53 {dimension_numbers = #tpu.dot_dimension_numbers<[1], [0], [0], [1], [0, 0, 1, 1], [], []>} : vector<128x128xbf16>, vector<128x128xbf16>, vector<128x128xf32> -> vector<128x128xf32>
    %c0_54 = arith.constant 0 : index
    %c0_55 = arith.constant 0 : index
    %70 = vector.load %arg4[%c0_54, %c0_55] : memref<128x1xf32, #tpu.memory_space<vmem>>, vector<128x1xf32>
    %71 = vector.broadcast %70 : vector<128x1xf32> to vector<128x128xf32>
    %72 = arith.mulf %69, %71 : vector<128x128xf32>
    %73 = arith.truncf %72 : vector<128x128xf32> to vector<128x128xbf16>
    %74 = tpu.concatenate %67, %73 in 1 : vector<128x128xbf16>, vector<128x128xbf16> -> vector<128x256xbf16>
    %c0_56 = arith.constant 0 : index
    %c0_57 = arith.constant 0 : index
    %75 = vector.load %arg5[%c0_56, %c0_57] : memref<256x128xbf16, #tpu.memory_space<vmem>>, vector<256x128xbf16>
    %cst_58 = arith.constant dense<0.000000e+00> : vector<128x128xf32>
    %76 = tpu.matmul %74, %75, %cst_58 {dimension_numbers = #tpu.dot_dimension_numbers<[1], [0], [0], [1], [0, 0, 1, 1], [], []>} : vector<128x256xbf16>, vector<256x128xbf16>, vector<128x128xf32> -> vector<128x128xf32>
    %c0_59 = arith.constant 0 : index
    %c0_60 = arith.constant 0 : index
    %77 = vector.load %arg6[%c0_59, %c0_60] : memref<1x128xf32, #tpu.memory_space<vmem>>, vector<1x128xf32>
    %78 = vector.broadcast %77 : vector<1x128xf32> to vector<128x128xf32>
    %79 = arith.addf %76, %78 : vector<128x128xf32>
    %cst_61 = arith.constant 0.000000e+00 : f32
    %80 = vector.broadcast %cst_61 : f32 to vector<128x128xf32>
    %81 = arith.maximumf %79, %80 : vector<128x128xf32>
    %82 = arith.truncf %81 : vector<128x128xf32> to vector<128x128xbf16>
    %c0_62 = arith.constant 0 : index
    %c0_63 = arith.constant 0 : index
    %83 = vector.load %arg7[%c0_62, %c0_63] : memref<16x128xbf16, #tpu.memory_space<vmem>>, vector<16x128xbf16>
    %cst_64 = arith.constant dense<0.000000e+00> : vector<16x128xf32>
    %84 = tpu.matmul %83, %82, %cst_64 {dimension_numbers = #tpu.dot_dimension_numbers<[1], [0], [0], [1], [0, 0, 1, 1], [], []>} : vector<16x128xbf16>, vector<128x128xbf16>, vector<16x128xf32> -> vector<16x128xf32>
    %c0_65 = arith.constant 0 : index
    %c0_66 = arith.constant 0 : index
    %85 = vector.load %arg8[%c0_65, %c0_66] : memref<16x1xf32, #tpu.memory_space<vmem>>, vector<16x1xf32>
    %86 = vector.broadcast %85 : vector<16x1xf32> to vector<16x128xf32>
    %87 = arith.mulf %84, %86 : vector<16x128xf32>
    %88 = arith.truncf %87 : vector<16x128xf32> to vector<16x128xbf16>
    %89 = vector.extract_strided_slice %82 {offsets = [0, 0], sizes = [16, 128], strides = [1, 1]} : vector<128x128xbf16> to vector<16x128xbf16>
    %90 = tpu.concatenate %89, %88 in 1 : vector<16x128xbf16>, vector<16x128xbf16> -> vector<16x256xbf16>
    %c0_67 = arith.constant 0 : index
    %c0_68 = arith.constant 0 : index
    %91 = vector.load %arg9[%c0_67, %c0_68] : memref<256x128xbf16, #tpu.memory_space<vmem>>, vector<256x128xbf16>
    %cst_69 = arith.constant dense<0.000000e+00> : vector<16x128xf32>
    %92 = tpu.matmul %90, %91, %cst_69 {dimension_numbers = #tpu.dot_dimension_numbers<[1], [0], [0], [1], [0, 0, 1, 1], [], []>} : vector<16x256xbf16>, vector<256x128xbf16>, vector<16x128xf32> -> vector<16x128xf32>
    %c0_70 = arith.constant 0 : index
    %c0_71 = arith.constant 0 : index
    %93 = vector.load %arg10[%c0_70, %c0_71] : memref<1x128xf32, #tpu.memory_space<vmem>>, vector<1x128xf32>
    %94 = vector.broadcast %93 : vector<1x128xf32> to vector<16x128xf32>
    %95 = arith.addf %92, %94 : vector<16x128xf32>
    %c0_72 = arith.constant 0 : index
    %c0_73 = arith.constant 0 : index
    %96 = vector.load %arg11[%c0_72, %c0_73] : memref<16x128xf32, #tpu.memory_space<vmem>>, vector<16x128xf32>
    tpu.vector_store %arg11[%c0_72, %c0_73], %95 {strides = array<i32>} : memref<16x128xf32, #tpu.memory_space<vmem>>, vector<16x128xf32>,
    return
  }
  func.func @transform_0(%arg0: i32, %arg1: memref<16xi32, #tpu.memory_space<smem>>) -> (i32, i32) {
    %c0_i32 = arith.constant 0 : i32
    %c0_i32_0 = arith.constant 0 : i32
    %c0_i32_1 = arith.constant 0 : i32
    return %c0_i32, %c0_i32_0 : i32, i32
  }
  func.func @transform_1(%arg0: i32, %arg1: memref<16xi32, #tpu.memory_space<smem>>) -> (i32, i32) {
    %c0_i32 = arith.constant 0 : i32
    %c0_i32_0 = arith.constant 0 : i32
    %c0_i32_1 = arith.constant 0 : i32
    return %c0_i32, %c0_i32_0 : i32, i32
  }
  func.func @transform_2(%arg0: i32, %arg1: memref<16xi32, #tpu.memory_space<smem>>) -> (i32, i32) {
    %c0_i32 = arith.constant 0 : i32
    %c0_i32_0 = arith.constant 0 : i32
    %c0_i32_1 = arith.constant 0 : i32
    return %c0_i32, %c0_i32_0 : i32, i32
  }
  func.func @transform_3(%arg0: i32, %arg1: memref<16xi32, #tpu.memory_space<smem>>) -> (i32, i32) {
    %c0_i32 = arith.constant 0 : i32
    %c0_i32_0 = arith.constant 0 : i32
    %c0_i32_1 = arith.constant 0 : i32
    return %c0_i32, %c0_i32_0 : i32, i32
  }
  func.func @transform_4(%arg0: i32, %arg1: memref<16xi32, #tpu.memory_space<smem>>) -> (i32, i32) {
    %c0_i32 = arith.constant 0 : i32
    %c0_i32_0 = arith.constant 0 : i32
    %c0_i32_1 = arith.constant 0 : i32
    return %c0_i32, %c0_i32_0 : i32, i32
  }
  func.func @transform_5(%arg0: i32, %arg1: memref<16xi32, #tpu.memory_space<smem>>) -> (i32, i32) {
    %c0_i32 = arith.constant 0 : i32
    %c0_i32_0 = arith.constant 0 : i32
    %c0_i32_1 = arith.constant 0 : i32
    return %c0_i32, %c0_i32_0 : i32, i32
  }
  func.func @transform_6(%arg0: i32, %arg1: memref<16xi32, #tpu.memory_space<smem>>) -> (i32, i32) {
    %c0_i32 = arith.constant 0 : i32
    %c0_i32_0 = arith.constant 0 : i32
    %c0_i32_1 = arith.constant 0 : i32
    return %c0_i32, %c0_i32_0 : i32, i32
  }
  func.func @transform_7(%arg0: i32, %arg1: memref<16xi32, #tpu.memory_space<smem>>) -> (i32, i32) {
    %c0_i32 = arith.constant 0 : i32
    %c0_i32_0 = arith.constant 0 : i32
    %c0_i32_1 = arith.constant 0 : i32
    return %c0_i32, %c0_i32_0 : i32, i32
  }
  func.func @transform_8(%arg0: i32, %arg1: memref<16xi32, #tpu.memory_space<smem>>) -> (i32, i32) {
    %c0_i32 = arith.constant 0 : i32
    %c0_i32_0 = arith.constant 0 : i32
    %c0_i32_1 = arith.constant 0 : i32
    return %c0_i32, %c0_i32_0 : i32, i32
  }
  func.func @transform_9(%arg0: i32, %arg1: memref<16xi32, #tpu.memory_space<smem>>) -> (i32, i32) {
    %c0_i32 = arith.constant 0 : i32
    %c0_i32_0 = arith.constant 0 : i32
    %c0_i32_1 = arith.constant 0 : i32
    return %c0_i32, %c0_i32_0 : i32, i32
  }
}

</mosaic_0001>

<llo_original>
// kernel: tpu_custom_call.1
$region0: #{tpu_custom_call.1}
  #allocation0 [shape = 'u32[]', space=smem, size = 0x4, offset = 0x4, fixed_abs, tag = 'smem constant byte address 0x4 - core index']
  #allocation1 [shape = 'u32[72,128]{1,0:T(1,128)}', space=vmem, size = 0x9000, scoped, tag = 'internal scratch']
  #allocation2 [shape = 'f32[128,128]{1,0:T(8,128)}', space=vmem, size = 0x10000, scoped, tag = 'scratch operand']
  #allocation3 [shape = 's32[1]{0}', space=sflag, size = 0x4, scoped, tag = 'scoped memory for tpu_custom_call.1']
  #allocation4 [shape = 'u8[512]{0}', space=smem, size = 0x200, scoped, tag = 'prefetched SMEM operand 0']
  %s0 = inlined_call_operand.vmem [shape: s32[16], index: 0, kind: input, shape index: {}]
  %s1 = inlined_call_operand.hbm [shape: f32[64,128], index: 1, kind: input, shape index: {}]
  %s2 = inlined_call_operand.hbm [shape: bf16[128,128], index: 2, kind: input, shape index: {}]
  %s3 = inlined_call_operand.vmem [shape: f32[128,1], index: 3, kind: input, shape index: {}]
  %s4 = inlined_call_operand.vmem [shape: bf16[256,128], index: 4, kind: input, shape index: {}]
  %s5 = inlined_call_operand.vmem [shape: f32[1,128], index: 5, kind: input, shape index: {}]
  %s6 = inlined_call_operand.vmem [shape: bf16[16,128], index: 6, kind: input, shape index: {}]
  %s7 = inlined_call_operand.vmem [shape: f32[16,1], index: 7, kind: input, shape index: {}]
  %s8 = inlined_call_operand.hbm [shape: bf16[256,128], index: 8, kind: input, shape index: {}]
  %s9 = inlined_call_operand.vmem [shape: f32[1,128], index: 9, kind: input, shape index: {}]
  %s10 = inlined_call_operand.hbm [shape: f32[16,128], index: 10, kind: output, shape index: {}]
  %s11 = sld [smem:[#allocation0]]
  $region58: #{tpu_custom_call.1} parent=0
    _
  %s13 = ssub.s32 1, %s11
  %s14 = scalar_select 0, %s13, %s11
  %s16 = sshll.u32 %s0, 4
  %s17 = int_to_ptr.vmem [resolvable:$true] %s16
  %19 = dma.vmem_to_smem %s17, 16, [#allocation4], [#allocation3]
  %21 = dma.done [#allocation3], 16
  %22 = sfence
  $region1: #{tpu_custom_call.1} parent=0
    #allocation5 [shape = 'u8[32768]{0}', space=vmem, size = 0x8000, scoped, tag = 'input window, operand 1, single buffered']
    #allocation6 [shape = 's32[1]{0}', space=sflag, size = 0x4, scoped, tag = 'scoped memory for tpu_custom_call.1']
    #allocation7 [shape = 's32[1]{0}', space=sflag, size = 0x4, scoped, tag = 'scoped memory for tpu_custom_call.1']
    #allocation8 [shape = 'u8[32768]{0}', space=vmem, size = 0x8000, scoped, tag = 'input window, operand 2, single buffered']
    #allocation9 [shape = 's32[1]{0}', space=sflag, size = 0x4, scoped, tag = 'scoped memory for tpu_custom_call.1']
    #allocation10 [shape = 'u8[65536]{0}', space=vmem, size = 0x10000, scoped, tag = 'input window, operand 8, single buffered']
    #allocation11 [shape = 'u8[8192]{0}', space=vmem, size = 0x2000, scoped, tag = 'output window, operand 0, single buffered']
    %23 = vsyncpa [#allocation6], 0
    %24 = vsyncpa [#allocation9], 0
    %25 = vsyncpa [#allocation7], 0
    // Predicated region
    $region2: #{tpu_custom_call.1} parent=1 // pred_check
      _
    $region3: #{tpu_custom_call.1} parent=1 // pred_check_branch
      %27 = sbr.rel (0) target = $region5
    $region4: #{tpu_custom_call.1} parent=1 // pred_region
      %29 = vsyncadd [#allocation6], 0
      %s30 = sshll.u32 %s1, 4
      %s31 = int_to_ptr.hbm [resolvable:$true] %s30
      %s32 = sshll.u32 [#allocation5], 4
      %s33 = int_to_ptr.vmem [resolvable:$true] %s32
      %38 = dma.hbm_to_vmem [thread:$0]  %s31, 1024, %s33, [#allocation6], 128, 128, 8
    $region5: #{tpu_custom_call.1} parent=1 // pred_fallthru
      _
    // Predicated region
    $region6: #{tpu_custom_call.1} parent=1 // pred_check
      _
    $region7: #{tpu_custom_call.1} parent=1 // pred_check_branch
      %40 = sbr.rel (0) target = $region9
    $region8: #{tpu_custom_call.1} parent=1 // pred_region
      %42 = vsyncadd [#allocation9], 0
      %s43 = sshll.u32 %s2, 4
      %s44 = int_to_ptr.hbm [resolvable:$true] %s43
      %s45 = sshll.u32 [#allocation8], 4
      %s46 = int_to_ptr.vmem [resolvable:$true] %s45
      %51 = dma.hbm_to_vmem [thread:$0]  %s44, 1024, %s46, [#allocation9], 64, 64, 4
    $region9: #{tpu_custom_call.1} parent=1 // pred_fallthru
      _
    // Predicated region
    $region10: #{tpu_custom_call.1} parent=1 // pred_check
      _
    $region11: #{tpu_custom_call.1} parent=1 // pred_check_branch
      %53 = sbr.rel (0) target = $region13
    $region12: #{tpu_custom_call.1} parent=1 // pred_region
      _
    $region13: #{tpu_custom_call.1} parent=1 // pred_fallthru
      _
    // Predicated region
    $region14: #{tpu_custom_call.1} parent=1 // pred_check
      _
    $region15: #{tpu_custom_call.1} parent=1 // pred_check_branch
      %55 = sbr.rel (0) target = $region17
    $region16: #{tpu_custom_call.1} parent=1 // pred_region
      _
    $region17: #{tpu_custom_call.1} parent=1 // pred_fallthru
      _
    // Predicated region
    $region18: #{tpu_custom_call.1} parent=1 // pred_check
      _
    $region19: #{tpu_custom_call.1} parent=1 // pred_check_branch
      %57 = sbr.rel (0) target = $region21
    $region20: #{tpu_custom_call.1} parent=1 // pred_region
      _
    $region21: #{tpu_custom_call.1} parent=1 // pred_fallthru
      _
    // Predicated region
    $region22: #{tpu_custom_call.1} parent=1 // pred_check
      _
    $region23: #{tpu_custom_call.1} parent=1 // pred_check_branch
      %59 = sbr.rel (0) target = $region25
    $region24: #{tpu_custom_call.1} parent=1 // pred_region
      _
    $region25: #{tpu_custom_call.1} parent=1 // pred_fallthru
      _
    // Predicated region
    $region26: #{tpu_custom_call.1} parent=1 // pred_check
      _
    $region27: #{tpu_custom_call.1} parent=1 // pred_check_branch
      %61 = sbr.rel (0) target = $region29
    $region28: #{tpu_custom_call.1} parent=1 // pred_region
      _
    $region29: #{tpu_custom_call.1} parent=1 // pred_fallthru
      _
    // Predicated region
    $region30: #{tpu_custom_call.1} parent=1 // pred_check
      _
    $region31: #{tpu_custom_call.1} parent=1 // pred_check_branch
      %63 = sbr.rel (0) target = $region33
    $region32: #{tpu_custom_call.1} parent=1 // pred_region
      %65 = vsyncadd [#allocation9], 0
      %s66 = sshll.u32 %s8, 4
      %s67 = int_to_ptr.hbm [resolvable:$true] %s66
      %s68 = sshll.u32 [#allocation10], 4
      %s69 = int_to_ptr.vmem [resolvable:$true] %s68
      %74 = dma.hbm_to_vmem [thread:$0]  %s67, 2048, %s69, [#allocation9], 64, 64, 4
    $region33: #{tpu_custom_call.1} parent=1 // pred_fallthru
      _
    // Predicated region
    $region34: #{tpu_custom_call.1} parent=1 // pred_check
      _
    $region35: #{tpu_custom_call.1} parent=1 // pred_check_branch
      %76 = sbr.rel (0) target = $region37
    $region36: #{tpu_custom_call.1} parent=1 // pred_region
      _
    $region37: #{tpu_custom_call.1} parent=1 // pred_fallthru
      _
    // Predicated region
    $region38: #{tpu_custom_call.1} parent=1 // pred_check
      _
    $region39: #{tpu_custom_call.1} parent=1 // pred_check_branch
      %78 = sbr.rel (0) target = $region41
    $region40: #{tpu_custom_call.1} parent=1 // pred_region
      %80 = dma.done [#allocation6], 1024
    $region41: #{tpu_custom_call.1} parent=1 // pred_fallthru
      _
    // Predicated region
    $region42: #{tpu_custom_call.1} parent=1 // pred_check
      _
    $region43: #{tpu_custom_call.1} parent=1 // pred_check_branch
      %82 = sbr.rel (0) target = $region45
    $region44: #{tpu_custom_call.1} parent=1 // pred_region
      %84 = dma.done [#allocation9], 1024
    $region45: #{tpu_custom_call.1} parent=1 // pred_fallthru
      _
    // Predicated region
    $region46: #{tpu_custom_call.1} parent=1 // pred_check
      _
    $region47: #{tpu_custom_call.1} parent=1 // pred_check_branch
      %86 = sbr.rel (0) target = $region49
    $region48: #{tpu_custom_call.1} parent=1 // pred_region
      %88 = dma.done [#allocation9], 2048
    $region49: #{tpu_custom_call.1} parent=1 // pred_fallthru
      _
    %89 = vst [vmem:[#allocation2 + $0x10] sm:$0xff] 0.0
    %90 = vst [vmem:[#allocation2 + $0x18] sm:$0xff] 0.0
    %91 = vst [vmem:[#allocation2 + $0x20] sm:$0xff] 0.0
    %92 = vst [vmem:[#allocation2 + $0x28] sm:$0xff] 0.0
    %93 = vst [vmem:[#allocation2 + $0x30] sm:$0xff] 0.0
    %94 = vst [vmem:[#allocation2 + $0x38] sm:$0xff] 0.0
    %95 = vst [vmem:[#allocation2 + $0x40] sm:$0xff] 0.0
    %96 = vst [vmem:[#allocation2 + $0x48] sm:$0xff] 0.0
    %97 = vst [vmem:[#allocation2 + $0x50] sm:$0xff] 0.0
    %98 = vst [vmem:[#allocation2 + $0x58] sm:$0xff] 0.0
    %99 = vst [vmem:[#allocation2 + $0x60] sm:$0xff] 0.0
    %100 = vst [vmem:[#allocation2 + $0x68] sm:$0xff] 0.0
    %101 = vst [vmem:[#allocation2 + $0x70] sm:$0xff] 0.0
    %102 = vst [vmem:[#allocation2 + $0x78] sm:$0xff] 0.0
    %s103 = sld [smem:[#allocation4]]
    %s104 = scalar_lea.vmem [#allocation5], %s103
    %v105 = vld [vmem:[%s104] sm:$0x1]
    %106 = vst [vmem:[#allocation2] sm:$0x1] %v105
    %s107 = sld [smem:[#allocation4 + $0x1]]
    %s108 = scalar_lea.vmem [#allocation5], %s107
    %v109 = vld [vmem:[%s108] sm:$0x1]
    %110 = vst [vmem:[#allocation2 + $0x1] sm:$0x1] %v109
    %s111 = sld [smem:[#allocation4 + $0x2]]
    %s112 = scalar_lea.vmem [#allocation5], %s111
    %v113 = vld [vmem:[%s112] sm:$0x1]
    %114 = vst [vmem:[#allocation2 + $0x2] sm:$0x1] %v113
    %s115 = sld [smem:[#allocation4 + $0x3]]
    %s116 = scalar_lea.vmem [#allocation5], %s115
    %v117 = vld [vmem:[%s116] sm:$0x1]
    %118 = vst [vmem:[#allocation2 + $0x3] sm:$0x1] %v117
    %s119 = sld [smem:[#allocation4 + $0x4]]
    %s120 = scalar_lea.vmem [#allocation5], %s119
    %v121 = vld [vmem:[%s120] sm:$0x1]
    %122 = vst [vmem:[#allocation2 + $0x4] sm:$0x1] %v121
    %s123 = sld [smem:[#allocation4 + $0x5]]
    %s124 = scalar_lea.vmem [#allocation5], %s123
    %v125 = vld [vmem:[%s124] sm:$0x1]
    %126 = vst [vmem:[#allocation2 + $0x5] sm:$0x1] %v125
    %s127 = sld [smem:[#allocation4 + $0x6]]
    %s128 = scalar_lea.vmem [#allocation5], %s127
    %v129 = vld [vmem:[%s128] sm:$0x1]
    %130 = vst [vmem:[#allocation2 + $0x6] sm:$0x1] %v129
    %s131 = sld [smem:[#allocation4 + $0x7]]
    %s132 = scalar_lea.vmem [#allocation5], %s131
    %v133 = vld [vmem:[%s132] sm:$0x1]
    %134 = vst [vmem:[#allocation2 + $0x7] sm:$0x1] %v133
    %s135 = sld [smem:[#allocation4 + $0x8]]
    %s136 = scalar_lea.vmem [#allocation5], %s135
    %v137 = vld [vmem:[%s136] sm:$0x1]
    %138 = vst [vmem:[#allocation2 + $0x8] sm:$0x1] %v137
    %s139 = sld [smem:[#allocation4 + $0x9]]
    %s140 = scalar_lea.vmem [#allocation5], %s139
    %v141 = vld [vmem:[%s140] sm:$0x1]
    %142 = vst [vmem:[#allocation2 + $0x9] sm:$0x1] %v141
    %s143 = sld [smem:[#allocation4 + $0xa]]
    %s144 = scalar_lea.vmem [#allocation5], %s143
    %v145 = vld [vmem:[%s144] sm:$0x1]
    %146 = vst [vmem:[#allocation2 + $0xa] sm:$0x1] %v145
    %s147 = sld [smem:[#allocation4 + $0xb]]
    %s148 = scalar_lea.vmem [#allocation5], %s147
    %v149 = vld [vmem:[%s148] sm:$0x1]
    %150 = vst [vmem:[#allocation2 + $0xb] sm:$0x1] %v149
    %s151 = sld [smem:[#allocation4 + $0xc]]
    %s152 = scalar_lea.vmem [#allocation5], %s151
    %v153 = vld [vmem:[%s152] sm:$0x1]
    %154 = vst [vmem:[#allocation2 + $0xc] sm:$0x1] %v153
    %s155 = sld [smem:[#allocation4 + $0xd]]
    %s156 = scalar_lea.vmem [#allocation5], %s155
    %v157 = vld [vmem:[%s156] sm:$0x1]
    %158 = vst [vmem:[#allocation2 + $0xd] sm:$0x1] %v157
    %s159 = sld [smem:[#allocation4 + $0xe]]
    %s160 = scalar_lea.vmem [#allocation5], %s159
    %v161 = vld [vmem:[%s160] sm:$0x1]
    %162 = vst [vmem:[#allocation2 + $0xe] sm:$0x1] %v161
    %s163 = sld [smem:[#allocation4 + $0xf]]
    %s164 = scalar_lea.vmem [#allocation5], %s163
    %v165 = vld [vmem:[%s164] sm:$0x1]
    %166 = vst [vmem:[#allocation2 + $0xf] sm:$0x1] %v165
    %v167 = vld [vmem:[#allocation2] sm:$0xff]
    %v168 = vld [vmem:[#allocation2 + $0x8] sm:$0xff]
    %v169 = vld [vmem:[#allocation2 + $0x10] sm:$0xff]
    %v170 = vld [vmem:[#allocation2 + $0x18] sm:$0xff]
    %v171 = vld [vmem:[#allocation2 + $0x20] sm:$0xff]
    %v172 = vld [vmem:[#allocation2 + $0x28] sm:$0xff]
    %v173 = vld [vmem:[#allocation2 + $0x30] sm:$0xff]
    %v174 = vld [vmem:[#allocation2 + $0x38] sm:$0xff]
    %v175 = vld [vmem:[#allocation2 + $0x40] sm:$0xff]
    %v176 = vld [vmem:[#allocation2 + $0x48] sm:$0xff]
    %v177 = vld [vmem:[#allocation2 + $0x50] sm:$0xff]
    %v178 = vld [vmem:[#allocation2 + $0x58] sm:$0xff]
    %v179 = vld [vmem:[#allocation2 + $0x60] sm:$0xff]
    %v180 = vld [vmem:[#allocation2 + $0x68] sm:$0xff]
    %v181 = vld [vmem:[#allocation2 + $0x70] sm:$0xff]
    %v182 = vld [vmem:[#allocation2 + $0x78] sm:$0xff]
    %v183 = vpack.c.bf16 %v167, %v167
    %v184 = vpack.c.bf16 %v168, %v168
    %v185 = vpack.c.bf16 %v169, %v169
    %v186 = vpack.c.bf16 %v170, %v170
    %v187 = vpack.c.bf16 %v171, %v171
    %v188 = vpack.c.bf16 %v172, %v172
    %v189 = vpack.c.bf16 %v173, %v173
    %v190 = vpack.c.bf16 %v174, %v174
    %v191 = vpack.c.bf16 %v175, %v175
    %v192 = vpack.c.bf16 %v176, %v176
    %v193 = vpack.c.bf16 %v177, %v177
    %v194 = vpack.c.bf16 %v178, %v178
    %v195 = vpack.c.bf16 %v179, %v179
    %v196 = vpack.c.bf16 %v180, %v180
    %v197 = vpack.c.bf16 %v181, %v181
    %v198 = vpack.c.bf16 %v182, %v182
    %v199 = vld [vmem:[#allocation8] sm:$0xf]
    %v200 = vld [vmem:[#allocation8 + $0x4] sm:$0xf]
    %v201 = vld [vmem:[#allocation8 + $0x8] sm:$0xf]
    %v202 = vld [vmem:[#allocation8 + $0xc] sm:$0xf]
    %v203 = vld [vmem:[#allocation8 + $0x10] sm:$0xf]
    %v204 = vld [vmem:[#allocation8 + $0x14] sm:$0xf]
    %v205 = vld [vmem:[#allocation8 + $0x18] sm:$0xf]
    %v206 = vld [vmem:[#allocation8 + $0x1c] sm:$0xf]
    %v207 = vld [vmem:[#allocation8 + $0x20] sm:$0xf]
    %v208 = vld [vmem:[#allocation8 + $0x24] sm:$0xf]
    %v209 = vld [vmem:[#allocation8 + $0x28] sm:$0xf]
    %v210 = vld [vmem:[#allocation8 + $0x2c] sm:$0xf]
    %v211 = vld [vmem:[#allocation8 + $0x30] sm:$0xf]
    %v212 = vld [vmem:[#allocation8 + $0x34] sm:$0xf]
    %v213 = vld [vmem:[#allocation8 + $0x38] sm:$0xf]
    %v214 = vld [vmem:[#allocation8 + $0x3c] sm:$0xf]
    %v231 = vunpack.c.l.b16 %v199
    %v232 = vunpack.c.l.b16 %v200
    %v233 = vunpack.c.l.b16 %v201
    %v234 = vunpack.c.l.b16 %v202
    %v235 = vunpack.c.l.b16 %v203
    %v236 = vunpack.c.l.b16 %v204
    %v237 = vunpack.c.l.b16 %v205
    %v238 = vunpack.c.l.b16 %v206
    %v239 = vunpack.c.l.b16 %v207
    %v240 = vunpack.c.l.b16 %v208
    %v241 = vunpack.c.l.b16 %v209
    %v242 = vunpack.c.l.b16 %v210
    %v243 = vunpack.c.l.b16 %v211
    %v244 = vunpack.c.l.b16 %v212
    %v245 = vunpack.c.l.b16 %v213
    %v246 = vunpack.c.l.b16 %v214
    %v247 = vpack.c.b16 %v232, %v231
    %v248 = vpack.c.b16 %v234, %v233
    %v249 = vpack.c.b16 %v236, %v235
    %v250 = vpack.c.b16 %v238, %v237
    %v251 = vpack.c.b16 %v240, %v239
    %v252 = vpack.c.b16 %v242, %v241
    %v253 = vpack.c.b16 %v244, %v243
    %v254 = vpack.c.b16 %v246, %v245
    %v279 = vunpack.c.l.b16 %v183
    %v280 = vunpack.c.l.b16 %v184
    %v281 = vunpack.c.l.b16 %v185
    %v282 = vunpack.c.l.b16 %v186
    %v283 = vunpack.c.l.b16 %v187
    %v284 = vunpack.c.l.b16 %v188
    %v285 = vunpack.c.l.b16 %v189
    %v286 = vunpack.c.l.b16 %v190
    %v287 = vunpack.c.l.b16 %v191
    %v288 = vunpack.c.l.b16 %v192
    %v289 = vunpack.c.l.b16 %v193
    %v290 = vunpack.c.l.b16 %v194
    %v291 = vunpack.c.l.b16 %v195
    %v292 = vunpack.c.l.b16 %v196
    %v293 = vunpack.c.l.b16 %v197
    %v294 = vunpack.c.l.b16 %v198
    %v295 = vpack.c.b16 %v280, %v279
    %v296 = vpack.c.b16 %v282, %v281
    %v297 = vpack.c.b16 %v284, %v283
    %v298 = vpack.c.b16 %v286, %v285
    %v299 = vpack.c.b16 %v288, %v287
    %v300 = vpack.c.b16 %v290, %v289
    %v301 = vpack.c.b16 %v292, %v291
    %v302 = vpack.c.b16 %v294, %v293
    %311 = vmatpush.bf16.msra.mxu0 %v302
    %312 = vmatpush.bf16.msra.mxu0 %v301
    %313 = vmatpush.bf16.msra.mxu0 %v300
    %314 = vmatpush.bf16.msra.mxu0 %v299
    %315 = vmatpush.bf16.msra.mxu0 %v298
    %316 = vmatpush.bf16.msra.mxu0 %v297
    %317 = vmatpush.bf16.msra.mxu0 %v296
    %318 = vmatpush.bf16.msra.mxu0 %v295
    %319 = vmatmul.bf16.gmra.mxu0 %v247
    %v320 = vpop.f32.mrf.mxu0
    %v321 = vadd.f32 0.0, %v320
    %v322 = vpop.f32.mrf.mxu0
    %v323 = vadd.f32 0.0, %v322
    %324 = vmatmul.bf16.gmra.mxu0 %v248
    %v325 = vpop.f32.mrf.mxu0
    %v326 = vadd.f32 0.0, %v325
    %v327 = vpop.f32.mrf.mxu0
    %v328 = vadd.f32 0.0, %v327
    %329 = vmatmul.bf16.gmra.mxu0 %v249
    %v330 = vpop.f32.mrf.mxu0
    %v331 = vadd.f32 0.0, %v330
    %v332 = vpop.f32.mrf.mxu0
    %v333 = vadd.f32 0.0, %v332
    %334 = vmatmul.bf16.gmra.mxu0 %v250
    %v335 = vpop.f32.mrf.mxu0
    %v336 = vadd.f32 0.0, %v335
    %v337 = vpop.f32.mrf.mxu0
    %v338 = vadd.f32 0.0, %v337
    %339 = vmatmul.bf16.gmra.mxu0 %v251
    %v340 = vpop.f32.mrf.mxu0
    %v341 = vadd.f32 0.0, %v340
    %v342 = vpop.f32.mrf.mxu0
    %v343 = vadd.f32 0.0, %v342
    %344 = vmatmul.bf16.gmra.mxu0 %v252
    %v345 = vpop.f32.mrf.mxu0
    %v346 = vadd.f32 0.0, %v345
    %v347 = vpop.f32.mrf.mxu0
    %v348 = vadd.f32 0.0, %v347
    %349 = vmatmul.bf16.gmra.mxu0 %v253
    %v350 = vpop.f32.mrf.mxu0
    %v351 = vadd.f32 0.0, %v350
    %v352 = vpop.f32.mrf.mxu0
    %v353 = vadd.f32 0.0, %v352
    %354 = vmatmul.bf16.gmra.mxu0 %v254
    %v355 = vpop.f32.mrf.mxu0
    %v356 = vadd.f32 0.0, %v355
    %v357 = vpop.f32.mrf.mxu0
    %v358 = vadd.f32 0.0, %v357
    %359 = vdwg.mxu0
    %v360 = vld [vmem:[%s3] sm:$0xff]
    %v361 = vld [vmem:[%s3 + $0x8] sm:$0xff]
    %v362 = vld [vmem:[%s3 + $0x10] sm:$0xff]
    %v363 = vld [vmem:[%s3 + $0x18] sm:$0xff]
    %v364 = vld [vmem:[%s3 + $0x20] sm:$0xff]
    %v365 = vld [vmem:[%s3 + $0x28] sm:$0xff]
    %v366 = vld [vmem:[%s3 + $0x30] sm:$0xff]
    %v367 = vld [vmem:[%s3 + $0x38] sm:$0xff]
    %v368 = vld [vmem:[%s3 + $0x40] sm:$0xff]
    %v369 = vld [vmem:[%s3 + $0x48] sm:$0xff]
    %v370 = vld [vmem:[%s3 + $0x50] sm:$0xff]
    %v371 = vld [vmem:[%s3 + $0x58] sm:$0xff]
    %v372 = vld [vmem:[%s3 + $0x60] sm:$0xff]
    %v373 = vld [vmem:[%s3 + $0x68] sm:$0xff]
    %v374 = vld [vmem:[%s3 + $0x70] sm:$0xff]
    %v375 = vld [vmem:[%s3 + $0x78] sm:$0xff]
    %377 = vset.pattern.permute.xlu0 0
    %378 = vperm.xlu0 %377, %v360
    %v379 = vpop.permute.xlu0 %378
    %382 = vset.pattern.permute.xlu0 0
    %383 = vperm.xlu0 %382, %v361
    %v384 = vpop.permute.xlu0 %383
    %387 = vset.pattern.permute.xlu0 0
    %388 = vperm.xlu0 %387, %v362
    %v389 = vpop.permute.xlu0 %388
    %392 = vset.pattern.permute.xlu0 0
    %393 = vperm.xlu0 %392, %v363
    %v394 = vpop.permute.xlu0 %393
    %397 = vset.pattern.permute.xlu0 0
    %398 = vperm.xlu0 %397, %v364
    %v399 = vpop.permute.xlu0 %398
    %402 = vset.pattern.permute.xlu0 0
    %403 = vperm.xlu0 %402, %v365
    %v404 = vpop.permute.xlu0 %403
    %407 = vset.pattern.permute.xlu0 0
    %408 = vperm.xlu0 %407, %v366
    %v409 = vpop.permute.xlu0 %408
    %412 = vset.pattern.permute.xlu0 0
    %413 = vperm.xlu0 %412, %v367
    %v414 = vpop.permute.xlu0 %413
    %417 = vset.pattern.permute.xlu0 0
    %418 = vperm.xlu0 %417, %v368
    %v419 = vpop.permute.xlu0 %418
    %422 = vset.pattern.permute.xlu0 0
    %423 = vperm.xlu0 %422, %v369
    %v424 = vpop.permute.xlu0 %423
    %427 = vset.pattern.permute.xlu0 0
    %428 = vperm.xlu0 %427, %v370
    %v429 = vpop.permute.xlu0 %428
    %432 = vset.pattern.permute.xlu0 0
    %433 = vperm.xlu0 %432, %v371
    %v434 = vpop.permute.xlu0 %433
    %437 = vset.pattern.permute.xlu0 0
    %438 = vperm.xlu0 %437, %v372
    %v439 = vpop.permute.xlu0 %438
    %442 = vset.pattern.permute.xlu0 0
    %443 = vperm.xlu0 %442, %v373
    %v444 = vpop.permute.xlu0 %443
    %447 = vset.pattern.permute.xlu0 0
    %448 = vperm.xlu0 %447, %v374
    %v449 = vpop.permute.xlu0 %448
    %452 = vset.pattern.permute.xlu0 0
    %453 = vperm.xlu0 %452, %v375
    %v454 = vpop.permute.xlu0 %453
    %v456 = vmul.f32 %v321, %v379
    %v457 = vmul.f32 %v323, %v384
    %v458 = vmul.f32 %v326, %v389
    %v459 = vmul.f32 %v328, %v394
    %v460 = vmul.f32 %v331, %v399
    %v461 = vmul.f32 %v333, %v404
    %v462 = vmul.f32 %v336, %v409
    %v463 = vmul.f32 %v338, %v414
    %v464 = vmul.f32 %v341, %v419
    %v465 = vmul.f32 %v343, %v424
    %v466 = vmul.f32 %v346, %v429
    %v467 = vmul.f32 %v348, %v434
    %v468 = vmul.f32 %v351, %v439
    %v469 = vmul.f32 %v353, %v444
    %v470 = vmul.f32 %v356, %v449
    %v471 = vmul.f32 %v358, %v454
    %v472 = vpack.c.bf16 %v456, %v456
    %v473 = vpack.c.bf16 %v457, %v457
    %v474 = vpack.c.bf16 %v458, %v458
    %v475 = vpack.c.bf16 %v459, %v459
    %v476 = vpack.c.bf16 %v460, %v460
    %v477 = vpack.c.bf16 %v461, %v461
    %v478 = vpack.c.bf16 %v462, %v462
    %v479 = vpack.c.bf16 %v463, %v463
    %v480 = vpack.c.bf16 %v464, %v464
    %v481 = vpack.c.bf16 %v465, %v465
    %v482 = vpack.c.bf16 %v466, %v466
    %v483 = vpack.c.bf16 %v467, %v467
    %v484 = vpack.c.bf16 %v468, %v468
    %v485 = vpack.c.bf16 %v469, %v469
    %v486 = vpack.c.bf16 %v470, %v470
    %v487 = vpack.c.bf16 %v471, %v471
    %v504 = vunpack.c.l.b16 %v472
    %v505 = vunpack.c.l.b16 %v473
    %v506 = vunpack.c.l.b16 %v474
    %v507 = vunpack.c.l.b16 %v475
    %v508 = vunpack.c.l.b16 %v476
    %v509 = vunpack.c.l.b16 %v477
    %v510 = vunpack.c.l.b16 %v478
    %v511 = vunpack.c.l.b16 %v479
    %v512 = vunpack.c.l.b16 %v480
    %v513 = vunpack.c.l.b16 %v481
    %v514 = vunpack.c.l.b16 %v482
    %v515 = vunpack.c.l.b16 %v483
    %v516 = vunpack.c.l.b16 %v484
    %v517 = vunpack.c.l.b16 %v485
    %v518 = vunpack.c.l.b16 %v486
    %v519 = vunpack.c.l.b16 %v487
    %v520 = vpack.c.b16 %v505, %v504
    %v521 = vpack.c.b16 %v507, %v506
    %v522 = vpack.c.b16 %v509, %v508
    %v523 = vpack.c.b16 %v511, %v510
    %v524 = vpack.c.b16 %v513, %v512
    %v525 = vpack.c.b16 %v515, %v514
    %v526 = vpack.c.b16 %v517, %v516
    %v527 = vpack.c.b16 %v519, %v518
    %v536 = vld [vmem:[%s4] sm:$0xf]
    %v537 = vld [vmem:[%s4 + $0x4] sm:$0xf]
    %v538 = vld [vmem:[%s4 + $0x8] sm:$0xf]
    %v539 = vld [vmem:[%s4 + $0xc] sm:$0xf]
    %v540 = vld [vmem:[%s4 + $0x10] sm:$0xf]
    %v541 = vld [vmem:[%s4 + $0x14] sm:$0xf]
    %v542 = vld [vmem:[%s4 + $0x18] sm:$0xf]
    %v543 = vld [vmem:[%s4 + $0x1c] sm:$0xf]
    %v544 = vld [vmem:[%s4 + $0x20] sm:$0xf]
    %v545 = vld [vmem:[%s4 + $0x24] sm:$0xf]
    %v546 = vld [vmem:[%s4 + $0x28] sm:$0xf]
    %v547 = vld [vmem:[%s4 + $0x2c] sm:$0xf]
    %v548 = vld [vmem:[%s4 + $0x30] sm:$0xf]
    %v549 = vld [vmem:[%s4 + $0x34] sm:$0xf]
    %v550 = vld [vmem:[%s4 + $0x38] sm:$0xf]
    %v551 = vld [vmem:[%s4 + $0x3c] sm:$0xf]
    %v552 = vld [vmem:[%s4 + $0x40] sm:$0xf]
    %v553 = vld [vmem:[%s4 + $0x44] sm:$0xf]
    %v554 = vld [vmem:[%s4 + $0x48] sm:$0xf]
    %v555 = vld [vmem:[%s4 + $0x4c] sm:$0xf]
    %v556 = vld [vmem:[%s4 + $0x50] sm:$0xf]
    %v557 = vld [vmem:[%s4 + $0x54] sm:$0xf]
    %v558 = vld [vmem:[%s4 + $0x58] sm:$0xf]
    %v559 = vld [vmem:[%s4 + $0x5c] sm:$0xf]
    %v560 = vld [vmem:[%s4 + $0x60] sm:$0xf]
    %v561 = vld [vmem:[%s4 + $0x64] sm:$0xf]
    %v562 = vld [vmem:[%s4 + $0x68] sm:$0xf]
    %v563 = vld [vmem:[%s4 + $0x6c] sm:$0xf]
    %v564 = vld [vmem:[%s4 + $0x70] sm:$0xf]
    %v565 = vld [vmem:[%s4 + $0x74] sm:$0xf]
    %v566 = vld [vmem:[%s4 + $0x78] sm:$0xf]
    %v567 = vld [vmem:[%s4 + $0x7c] sm:$0xf]
    %v568 = vld [vmem:[%s5] sm:$0x1]
    %v570 = vperm.slane %v568, 0
    %v604 = vunpack.c.l.b16 %v536
    %v605 = vunpack.c.l.b16 %v537
    %v606 = vunpack.c.l.b16 %v538
    %v607 = vunpack.c.l.b16 %v539
    %v608 = vunpack.c.l.b16 %v540
    %v609 = vunpack.c.l.b16 %v541
    %v610 = vunpack.c.l.b16 %v542
    %v611 = vunpack.c.l.b16 %v543
    %v612 = vunpack.c.l.b16 %v544
    %v613 = vunpack.c.l.b16 %v545
    %v614 = vunpack.c.l.b16 %v546
    %v615 = vunpack.c.l.b16 %v547
    %v616 = vunpack.c.l.b16 %v548
    %v617 = vunpack.c.l.b16 %v549
    %v618 = vunpack.c.l.b16 %v550
    %v619 = vunpack.c.l.b16 %v551
    %v620 = vunpack.c.l.b16 %v552
    %v621 = vunpack.c.l.b16 %v553
    %v622 = vunpack.c.l.b16 %v554
    %v623 = vunpack.c.l.b16 %v555
    %v624 = vunpack.c.l.b16 %v556
    %v625 = vunpack.c.l.b16 %v557
    %v626 = vunpack.c.l.b16 %v558
    %v627 = vunpack.c.l.b16 %v559
    %v628 = vunpack.c.l.b16 %v560
    %v629 = vunpack.c.l.b16 %v561
    %v630 = vunpack.c.l.b16 %v562
    %v631 = vunpack.c.l.b16 %v563
    %v632 = vunpack.c.l.b16 %v564
    %v633 = vunpack.c.l.b16 %v565
    %v634 = vunpack.c.l.b16 %v566
    %v635 = vunpack.c.l.b16 %v567
    %v636 = vpack.c.b16 %v605, %v604
    %v637 = vpack.c.b16 %v607, %v606
    %v638 = vpack.c.b16 %v609, %v608
    %v639 = vpack.c.b16 %v611, %v610
    %v640 = vpack.c.b16 %v613, %v612
    %v641 = vpack.c.b16 %v615, %v614
    %v642 = vpack.c.b16 %v617, %v616
    %v643 = vpack.c.b16 %v619, %v618
    %v644 = vpack.c.b16 %v621, %v620
    %v645 = vpack.c.b16 %v623, %v622
    %v646 = vpack.c.b16 %v625, %v624
    %v647 = vpack.c.b16 %v627, %v626
    %v648 = vpack.c.b16 %v629, %v628
    %v649 = vpack.c.b16 %v631, %v630
    %v650 = vpack.c.b16 %v633, %v632
    %v651 = vpack.c.b16 %v635, %v634
    %668 = vmatpush.bf16.msra.mxu0 %v643
    %669 = vmatpush.bf16.msra.mxu0 %v642
    %670 = vmatpush.bf16.msra.mxu0 %v641
    %671 = vmatpush.bf16.msra.mxu0 %v640
    %672 = vmatpush.bf16.msra.mxu0 %v639
    %673 = vmatpush.bf16.msra.mxu0 %v638
    %674 = vmatpush.bf16.msra.mxu0 %v637
    %675 = vmatpush.bf16.msra.mxu0 %v636
    %676 = vmatmul.bf16.gmra.mxu0 %v295
    %v677 = vpop.f32.mrf.mxu0
    %v678 = vadd.f32 %v570, %v677
    %v679 = vpop.f32.mrf.mxu0
    %v680 = vadd.f32 %v570, %v679
    %681 = vmatmul.bf16.gmra.mxu0 %v296
    %v682 = vpop.f32.mrf.mxu0
    %v683 = vadd.f32 %v570, %v682
    %v684 = vpop.f32.mrf.mxu0
    %v685 = vadd.f32 %v570, %v684
    %686 = vmatmul.bf16.gmra.mxu0 %v297
    %v687 = vpop.f32.mrf.mxu0
    %v688 = vadd.f32 %v570, %v687
    %v689 = vpop.f32.mrf.mxu0
    %v690 = vadd.f32 %v570, %v689
    %691 = vmatmul.bf16.gmra.mxu0 %v298
    %v692 = vpop.f32.mrf.mxu0
    %v693 = vadd.f32 %v570, %v692
    %v694 = vpop.f32.mrf.mxu0
    %v695 = vadd.f32 %v570, %v694
    %696 = vmatmul.bf16.gmra.mxu0 %v299
    %v697 = vpop.f32.mrf.mxu0
    %v698 = vadd.f32 %v570, %v697
    %v699 = vpop.f32.mrf.mxu0
    %v700 = vadd.f32 %v570, %v699
    %701 = vmatmul.bf16.gmra.mxu0 %v300
    %v702 = vpop.f32.mrf.mxu0
    %v703 = vadd.f32 %v570, %v702
    %v704 = vpop.f32.mrf.mxu0
    %v705 = vadd.f32 %v570, %v704
    %706 = vmatmul.bf16.gmra.mxu0 %v301
    %v707 = vpop.f32.mrf.mxu0
    %v708 = vadd.f32 %v570, %v707
    %v709 = vpop.f32.mrf.mxu0
    %v710 = vadd.f32 %v570, %v709
    %711 = vmatmul.bf16.gmra.mxu0 %v302
    %v712 = vpop.f32.mrf.mxu0
    %v713 = vadd.f32 %v570, %v712
    %v714 = vpop.f32.mrf.mxu0
    %v715 = vadd.f32 %v570, %v714
    %716 = vdwg.mxu0
    %717 = vmatpush.bf16.msra.mxu0 %v651
    %718 = vmatpush.bf16.msra.mxu0 %v650
    %719 = vmatpush.bf16.msra.mxu0 %v649
    %720 = vmatpush.bf16.msra.mxu0 %v648
    %721 = vmatpush.bf16.msra.mxu0 %v647
    %722 = vmatpush.bf16.msra.mxu0 %v646
    %723 = vmatpush.bf16.msra.mxu0 %v645
    %724 = vmatpush.bf16.msra.mxu0 %v644
    %725 = vmatmul.bf16.gmra.mxu0 %v520
    %v726 = vpop.f32.mrf.mxu0
    %v727 = vadd.f32 %v678, %v726
    %v728 = vpop.f32.mrf.mxu0
    %v729 = vadd.f32 %v680, %v728
    %730 = vmatmul.bf16.gmra.mxu0 %v521
    %v731 = vpop.f32.mrf.mxu0
    %v732 = vadd.f32 %v683, %v731
    %v733 = vpop.f32.mrf.mxu0
    %v734 = vadd.f32 %v685, %v733
    %735 = vmatmul.bf16.gmra.mxu0 %v522
    %v736 = vpop.f32.mrf.mxu0
    %v737 = vadd.f32 %v688, %v736
    %v738 = vpop.f32.mrf.mxu0
    %v739 = vadd.f32 %v690, %v738
    %740 = vmatmul.bf16.gmra.mxu0 %v523
    %v741 = vpop.f32.mrf.mxu0
    %v742 = vadd.f32 %v693, %v741
    %v743 = vpop.f32.mrf.mxu0
    %v744 = vadd.f32 %v695, %v743
    %745 = vmatmul.bf16.gmra.mxu0 %v524
    %v746 = vpop.f32.mrf.mxu0
    %v747 = vadd.f32 %v698, %v746
    %v748 = vpop.f32.mrf.mxu0
    %v749 = vadd.f32 %v700, %v748
    %750 = vmatmul.bf16.gmra.mxu0 %v525
    %v751 = vpop.f32.mrf.mxu0
    %v752 = vadd.f32 %v703, %v751
    %v753 = vpop.f32.mrf.mxu0
    %v754 = vadd.f32 %v705, %v753
    %755 = vmatmul.bf16.gmra.mxu0 %v526
    %v756 = vpop.f32.mrf.mxu0
    %v757 = vadd.f32 %v708, %v756
    %v758 = vpop.f32.mrf.mxu0
    %v759 = vadd.f32 %v710, %v758
    %760 = vmatmul.bf16.gmra.mxu0 %v527
    %v761 = vpop.f32.mrf.mxu0
    %v762 = vadd.f32 %v713, %v761
    %v763 = vpop.f32.mrf.mxu0
    %v764 = vadd.f32 %v715, %v763
    %765 = vdwg.mxu0
    %v766 = vmax.f32 %v727, 0.0
    %v767 = vmax.f32 %v729, 0.0
    %v768 = vmax.f32 %v732, 0.0
    %v769 = vmax.f32 %v734, 0.0
    %v770 = vmax.f32 %v737, 0.0
    %v771 = vmax.f32 %v739, 0.0
    %v772 = vmax.f32 %v742, 0.0
    %v773 = vmax.f32 %v744, 0.0
    %v774 = vmax.f32 %v747, 0.0
    %v775 = vmax.f32 %v749, 0.0
    %v776 = vmax.f32 %v752, 0.0
    %v777 = vmax.f32 %v754, 0.0
    %v778 = vmax.f32 %v757, 0.0
    %v779 = vmax.f32 %v759, 0.0
    %v780 = vmax.f32 %v762, 0.0
    %v781 = vmax.f32 %v764, 0.0
    %v782 = vpack.c.bf16 %v766, %v766
    %v783 = vpack.c.bf16 %v767, %v767
    %v784 = vpack.c.bf16 %v768, %v768
    %v785 = vpack.c.bf16 %v769, %v769
    %v786 = vpack.c.bf16 %v770, %v770
    %v787 = vpack.c.bf16 %v771, %v771
    %v788 = vpack.c.bf16 %v772, %v772
    %v789 = vpack.c.bf16 %v773, %v773
    %v790 = vpack.c.bf16 %v774, %v774
    %v791 = vpack.c.bf16 %v775, %v775
    %v792 = vpack.c.bf16 %v776, %v776
    %v793 = vpack.c.bf16 %v777, %v777
    %v794 = vpack.c.bf16 %v778, %v778
    %v795 = vpack.c.bf16 %v779, %v779
    %v796 = vpack.c.bf16 %v780, %v780
    %v797 = vpack.c.bf16 %v781, %v781
    %v798 = vld [vmem:[%s6] sm:$0xf]
    %v799 = vld [vmem:[%s6 + $0x4] sm:$0xf]
    %v802 = vunpack.c.l.b16 %v798
    %v803 = vunpack.c.l.b16 %v799
    %v804 = vpack.c.b16 %v803, %v802
    %v822 = vunpack.c.l.b16 %v782
    %v823 = vunpack.c.l.b16 %v783
    %v824 = vunpack.c.l.b16 %v784
    %v825 = vunpack.c.l.b16 %v785
    %v826 = vunpack.c.l.b16 %v786
    %v827 = vunpack.c.l.b16 %v787
    %v828 = vunpack.c.l.b16 %v788
    %v829 = vunpack.c.l.b16 %v789
    %v830 = vunpack.c.l.b16 %v790
    %v831 = vunpack.c.l.b16 %v791
    %v832 = vunpack.c.l.b16 %v792
    %v833 = vunpack.c.l.b16 %v793
    %v834 = vunpack.c.l.b16 %v794
    %v835 = vunpack.c.l.b16 %v795
    %v836 = vunpack.c.l.b16 %v796
    %v837 = vunpack.c.l.b16 %v797
    %v838 = vpack.c.b16 %v823, %v822
    %v839 = vpack.c.b16 %v825, %v824
    %v840 = vpack.c.b16 %v827, %v826
    %v841 = vpack.c.b16 %v829, %v828
    %v842 = vpack.c.b16 %v831, %v830
    %v843 = vpack.c.b16 %v833, %v832
    %v844 = vpack.c.b16 %v835, %v834
    %v845 = vpack.c.b16 %v837, %v836
    %854 = vmatpush.bf16.msra.mxu0 %v845
    %855 = vmatpush.bf16.msra.mxu0 %v844
    %856 = vmatpush.bf16.msra.mxu0 %v843
    %857 = vmatpush.bf16.msra.mxu0 %v842
    %858 = vmatpush.bf16.msra.mxu0 %v841
    %859 = vmatpush.bf16.msra.mxu0 %v840
    %860 = vmatpush.bf16.msra.mxu0 %v839
    %861 = vmatpush.bf16.msra.mxu0 %v838
    %862 = vmatmul.bf16.gmra.mxu0 %v804
    %v863 = vpop.f32.mrf.mxu0
    %v864 = vadd.f32 0.0, %v863
    %v865 = vpop.f32.mrf.mxu0
    %v866 = vadd.f32 0.0, %v865
    %867 = vdwg.mxu0
    %v868 = vld [vmem:[%s7] sm:$0xff]
    %v869 = vld [vmem:[%s7 + $0x8] sm:$0xff]
    %871 = vset.pattern.permute.xlu0 0
    %872 = vperm.xlu0 %871, %v868
    %v873 = vpop.permute.xlu0 %872
    %876 = vset.pattern.permute.xlu0 0
    %877 = vperm.xlu0 %876, %v869
    %v878 = vpop.permute.xlu0 %877
    %v880 = vmul.f32 %v864, %v873
    %v881 = vmul.f32 %v866, %v878
    %v882 = vpack.c.bf16 %v880, %v880
    %v883 = vpack.c.bf16 %v881, %v881
    %v886 = vunpack.c.l.b16 %v882
    %v887 = vunpack.c.l.b16 %v883
    %v888 = vpack.c.b16 %v887, %v886
    %v890 = vld [vmem:[#allocation10] sm:$0xf]
    %v891 = vld [vmem:[#allocation10 + $0x4] sm:$0xf]
    %v892 = vld [vmem:[#allocation10 + $0x8] sm:$0xf]
    %v893 = vld [vmem:[#allocation10 + $0xc] sm:$0xf]
    %v894 = vld [vmem:[#allocation10 + $0x10] sm:$0xf]
    %v895 = vld [vmem:[#allocation10 + $0x14] sm:$0xf]
    %v896 = vld [vmem:[#allocation10 + $0x18] sm:$0xf]
    %v897 = vld [vmem:[#allocation10 + $0x1c] sm:$0xf]
    %v898 = vld [vmem:[#allocation10 + $0x20] sm:$0xf]
    %v899 = vld [vmem:[#allocation10 + $0x24] sm:$0xf]
    %v900 = vld [vmem:[#allocation10 + $0x28] sm:$0xf]
    %v901 = vld [vmem:[#allocation10 + $0x2c] sm:$0xf]
    %v902 = vld [vmem:[#allocation10 + $0x30] sm:$0xf]
    %v903 = vld [vmem:[#allocation10 + $0x34] sm:$0xf]
    %v904 = vld [vmem:[#allocation10 + $0x38] sm:$0xf]
    %v905 = vld [vmem:[#allocation10 + $0x3c] sm:$0xf]
    %v906 = vld [vmem:[#allocation10 + $0x40] sm:$0xf]
    %v907 = vld [vmem:[#allocation10 + $0x44] sm:$0xf]
    %v908 = vld [vmem:[#allocation10 + $0x48] sm:$0xf]
    %v909 = vld [vmem:[#allocation10 + $0x4c] sm:$0xf]
    %v910 = vld [vmem:[#allocation10 + $0x50] sm:$0xf]
    %v911 = vld [vmem:[#allocation10 + $0x54] sm:$0xf]
    %v912 = vld [vmem:[#allocation10 + $0x58] sm:$0xf]
    %v913 = vld [vmem:[#allocation10 + $0x5c] sm:$0xf]
    %v914 = vld [vmem:[#allocation10 + $0x60] sm:$0xf]
    %v915 = vld [vmem:[#allocation10 + $0x64] sm:$0xf]
    %v916 = vld [vmem:[#allocation10 + $0x68] sm:$0xf]
    %v917 = vld [vmem:[#allocation10 + $0x6c] sm:$0xf]
    %v918 = vld [vmem:[#allocation10 + $0x70] sm:$0xf]
    %v919 = vld [vmem:[#allocation10 + $0x74] sm:$0xf]
    %v920 = vld [vmem:[#allocation10 + $0x78] sm:$0xf]
    %v921 = vld [vmem:[#allocation10 + $0x7c] sm:$0xf]
    %v922 = vld [vmem:[%s9] sm:$0x1]
    %v924 = vperm.slane %v922, 0
    %v958 = vunpack.c.l.b16 %v890
    %v959 = vunpack.c.l.b16 %v891
    %v960 = vunpack.c.l.b16 %v892
    %v961 = vunpack.c.l.b16 %v893
    %v962 = vunpack.c.l.b16 %v894
    %v963 = vunpack.c.l.b16 %v895
    %v964 = vunpack.c.l.b16 %v896
    %v965 = vunpack.c.l.b16 %v897
    %v966 = vunpack.c.l.b16 %v898
    %v967 = vunpack.c.l.b16 %v899
    %v968 = vunpack.c.l.b16 %v900
    %v969 = vunpack.c.l.b16 %v901
    %v970 = vunpack.c.l.b16 %v902
    %v971 = vunpack.c.l.b16 %v903
    %v972 = vunpack.c.l.b16 %v904
    %v973 = vunpack.c.l.b16 %v905
    %v974 = vunpack.c.l.b16 %v906
    %v975 = vunpack.c.l.b16 %v907
    %v976 = vunpack.c.l.b16 %v908
    %v977 = vunpack.c.l.b16 %v909
    %v978 = vunpack.c.l.b16 %v910
    %v979 = vunpack.c.l.b16 %v911
    %v980 = vunpack.c.l.b16 %v912
    %v981 = vunpack.c.l.b16 %v913
    %v982 = vunpack.c.l.b16 %v914
    %v983 = vunpack.c.l.b16 %v915
    %v984 = vunpack.c.l.b16 %v916
    %v985 = vunpack.c.l.b16 %v917
    %v986 = vunpack.c.l.b16 %v918
    %v987 = vunpack.c.l.b16 %v919
    %v988 = vunpack.c.l.b16 %v920
    %v989 = vunpack.c.l.b16 %v921
    %v990 = vpack.c.b16 %v959, %v958
    %v991 = vpack.c.b16 %v961, %v960
    %v992 = vpack.c.b16 %v963, %v962
    %v993 = vpack.c.b16 %v965, %v964
    %v994 = vpack.c.b16 %v967, %v966
    %v995 = vpack.c.b16 %v969, %v968
    %v996 = vpack.c.b16 %v971, %v970
    %v997 = vpack.c.b16 %v973, %v972
    %v998 = vpack.c.b16 %v975, %v974
    %v999 = vpack.c.b16 %v977, %v976
    %v1000 = vpack.c.b16 %v979, %v978
    %v1001 = vpack.c.b16 %v981, %v980
    %v1002 = vpack.c.b16 %v983, %v982
    %v1003 = vpack.c.b16 %v985, %v984
    %v1004 = vpack.c.b16 %v987, %v986
    %v1005 = vpack.c.b16 %v989, %v988
    %1022 = vmatpush.bf16.msra.mxu0 %v997
    %1023 = vmatpush.bf16.msra.mxu0 %v996
    %1024 = vmatpush.bf16.msra.mxu0 %v995
    %1025 = vmatpush.bf16.msra.mxu0 %v994
    %1026 = vmatpush.bf16.msra.mxu0 %v993
    %1027 = vmatpush.bf16.msra.mxu0 %v992
    %1028 = vmatpush.bf16.msra.mxu0 %v991
    %1029 = vmatpush.bf16.msra.mxu0 %v990
    %1030 = vmatmul.bf16.gmra.mxu0 %v838
    %v1031 = vpop.f32.mrf.mxu0
    %v1032 = vadd.f32 %v924, %v1031
    %v1033 = vpop.f32.mrf.mxu0
    %v1034 = vadd.f32 %v924, %v1033
    %1035 = vdwg.mxu0
    %1036 = vmatpush.bf16.msra.mxu0 %v1005
    %1037 = vmatpush.bf16.msra.mxu0 %v1004
    %1038 = vmatpush.bf16.msra.mxu0 %v1003
    %1039 = vmatpush.bf16.msra.mxu0 %v1002
    %1040 = vmatpush.bf16.msra.mxu0 %v1001
    %1041 = vmatpush.bf16.msra.mxu0 %v1000
    %1042 = vmatpush.bf16.msra.mxu0 %v999
    %1043 = vmatpush.bf16.msra.mxu0 %v998
    %1044 = vmatmul.bf16.gmra.mxu0 %v888
    %v1045 = vpop.f32.mrf.mxu0
    %v1046 = vadd.f32 %v1032, %v1045
    %v1047 = vpop.f32.mrf.mxu0
    %v1048 = vadd.f32 %v1034, %v1047
    %1049 = vdwg.mxu0
    %1050 = vst [vmem:[#allocation11] sm:$0xff] %v1046
    %1051 = vst [vmem:[#allocation11 + $0x8] sm:$0xff] %v1048
    // Predicated region
    $region50: #{tpu_custom_call.1} parent=1 // pred_check
      _
    $region51: #{tpu_custom_call.1} parent=1 // pred_check_branch
      %1053 = sbr.rel (0) target = $region53
    $region52: #{tpu_custom_call.1} parent=1 // pred_region
      %1055 = vsyncadd [#allocation7], 0
      %s1056 = sshll.u32 [#allocation11], 4
      %s1057 = int_to_ptr.vmem [resolvable:$true] %s1056
      %s1058 = sshll.u32 %s10, 4
      %s1059 = int_to_ptr.hbm [resolvable:$true] %s1058
      %1064 = dma.vmem_to_hbm [thread:$0]  %s1057, 256, %s1059, [#allocation7], 128, 128, 8
    $region53: #{tpu_custom_call.1} parent=1 // pred_fallthru
      _
    // Predicated region
    $region54: #{tpu_custom_call.1} parent=1 // pred_check
      _
    $region55: #{tpu_custom_call.1} parent=1 // pred_check_branch
      %1066 = sbr.rel (0) target = $region57
    $region56: #{tpu_custom_call.1} parent=1 // pred_region
      %1068 = dma.done [#allocation7], 256
    $region57: #{tpu_custom_call.1} parent=1 // pred_fallthru
      _
    %1069 = vsyncpa [#allocation6], 1
    %1070 = vsyncpa [#allocation9], 1
    %1071 = vsyncpa [#allocation7], 1

// kernel: tpu_custom_call.1
$region0: #{tpu_custom_call.1}
  #allocation0 [shape = 'u32[]', space=smem, size = 0x4, offset = 0x4, fixed_abs, tag = 'smem constant byte address 0x4 - core index']
  #allocation1 [shape = 'u32[72,128]{1,0:T(1,128)}', space=vmem, size = 0x9000, scoped, tag = 'internal scratch']
  #allocation2 [shape = 'f32[128,128]{1,0:T(8,128)}', space=vmem, size = 0x10000, scoped, tag = 'scratch operand']
  #allocation3 [shape = 's32[1]{0}', space=sflag, size = 0x4, scoped, tag = 'scoped memory for tpu_custom_call.1']
  #allocation4 [shape = 'u8[512]{0}', space=smem, size = 0x200, scoped, tag = 'prefetched SMEM operand 0']
  %s0 = inlined_call_operand.vmem [shape: s32[16], index: 0, kind: input, shape index: {}]
  %s1 = inlined_call_operand.hbm [shape: f32[64,128], index: 1, kind: input, shape index: {}]
  %s2 = inlined_call_operand.hbm [shape: bf16[128,128], index: 2, kind: input, shape index: {}]
  %s3 = inlined_call_operand.vmem [shape: f32[128,1], index: 3, kind: input, shape index: {}]
  %s4 = inlined_call_operand.vmem [shape: bf16[256,128], index: 4, kind: input, shape index: {}]
  %s5 = inlined_call_operand.vmem [shape: f32[1,128], index: 5, kind: input, shape index: {}]
  %s6 = inlined_call_operand.vmem [shape: bf16[16,128], index: 6, kind: input, shape index: {}]
  %s7 = inlined_call_operand.vmem [shape: f32[16,1], index: 7, kind: input, shape index: {}]
  %s8 = inlined_call_operand.hbm [shape: bf16[256,128], index: 8, kind: input, shape index: {}]
  %s9 = inlined_call_operand.vmem [shape: f32[1,128], index: 9, kind: input, shape index: {}]
  %s10 = inlined_call_operand.hbm [shape: f32[16,128], index: 10, kind: output, shape index: {}]
  %s11 = sld [smem:[#allocation0]]
  $region58: #{tpu_custom_call.1} parent=0
    _
  %s13 = ssub.s32 1, %s11
  %s14 = scalar_select 0, %s13, %s11
  %s16 = sshll.u32 %s0, 4
  %s17 = int_to_ptr.vmem [resolvable:$true] %s16
  %19 = dma.vmem_to_smem %s17, 16, [#allocation4], [#allocation3]
  %21 = dma.done [#allocation3], 16
  %22 = sfence
  $region1: #{tpu_custom_call.1} parent=0
    #allocation5 [shape = 'u8[32768]{0}', space=vmem, size = 0x8000, scoped, tag = 'input window, operand 1, single buffered']
    #allocation6 [shape = 's32[1]{0}', space=sflag, size = 0x4, scoped, tag = 'scoped memory for tpu_custom_call.1']
    #allocation7 [shape = 's32[1]{0}', space=sflag, size = 0x4, scoped, tag = 'scoped memory for tpu_custom_call.1']
    #allocation8 [shape = 'u8[32768]{0}', space=vmem, size = 0x8000, scoped, tag = 'input window, operand 2, single buffered']
    #allocation9 [shape = 's32[1]{0}', space=sflag, size = 0x4, scoped, tag = 'scoped memory for tpu_custom_call.1']
    #allocation10 [shape = 'u8[65536]{0}', space=vmem, size = 0x10000, scoped, tag = 'input window, operand 8, single buffered']
    #allocation11 [shape = 'u8[8192]{0}', space=vmem, size = 0x2000, scoped, tag = 'output window, operand 0, single buffered']
    %23 = vsyncpa [#allocation6], 0
    %24 = vsyncpa [#allocation9], 0
    %25 = vsyncpa [#allocation7], 0
    // Predicated region
    $region2: #{tpu_custom_call.1} parent=1 // pred_check
      _
    $region3: #{tpu_custom_call.1} parent=1 // pred_check_branch
      %27 = sbr.rel (0) target = $region5
    $region4: #{tpu_custom_call.1} parent=1 // pred_region
      %29 = vsyncadd [#allocation6], 0
      %s30 = sshll.u32 %s1, 4
      %s31 = int_to_ptr.hbm [resolvable:$true] %s30
      %s32 = sshll.u32 [#allocation5], 4
      %s33 = int_to_ptr.vmem [resolvable:$true] %s32
      %38 = dma.hbm_to_vmem [thread:$0]  %s31, 1024, %s33, [#allocation6], 128, 128, 8
    $region5: #{tpu_custom_call.1} parent=1 // pred_fallthru
      _
    // Predicated region
    $region6: #{tpu_custom_call.1} parent=1 // pred_check
      _
    $region7: #{tpu_custom_call.1} parent=1 // pred_check_branch
      %40 = sbr.rel (0) target = $region9
    $region8: #{tpu_custom_call.1} parent=1 // pred_region
      %42 = vsyncadd [#allocation9], 0
      %s43 = sshll.u32 %s2, 4
      %s44 = int_to_ptr.hbm [resolvable:$true] %s43
      %s45 = sshll.u32 [#allocation8], 4
      %s46 = int_to_ptr.vmem [resolvable:$true] %s45
      %51 = dma.hbm_to_vmem [thread:$0]  %s44, 1024, %s46, [#allocation9], 64, 64, 4
    $region9: #{tpu_custom_call.1} parent=1 // pred_fallthru
      _
    // Predicated region
    $region10: #{tpu_custom_call.1} parent=1 // pred_check
      _
    $region11: #{tpu_custom_call.1} parent=1 // pred_check_branch
      %53 = sbr.rel (0) target = $region13
    $region12: #{tpu_custom_call.1} parent=1 // pred_region
      _
    $region13: #{tpu_custom_call.1} parent=1 // pred_fallthru
      _
    // Predicated region
    $region14: #{tpu_custom_call.1} parent=1 // pred_check
      _
    $region15: #{tpu_custom_call.1} parent=1 // pred_check_branch
      %55 = sbr.rel (0) target = $region17
    $region16: #{tpu_custom_call.1} parent=1 // pred_region
      _
    $region17: #{tpu_custom_call.1} parent=1 // pred_fallthru
      _
    // Predicated region
    $region18: #{tpu_custom_call.1} parent=1 // pred_check
      _
    $region19: #{tpu_custom_call.1} parent=1 // pred_check_branch
      %57 = sbr.rel (0) target = $region21
    $region20: #{tpu_custom_call.1} parent=1 // pred_region
      _
    $region21: #{tpu_custom_call.1} parent=1 // pred_fallthru
      _
    // Predicated region
    $region22: #{tpu_custom_call.1} parent=1 // pred_check
      _
    $region23: #{tpu_custom_call.1} parent=1 // pred_check_branch
      %59 = sbr.rel (0) target = $region25
    $region24: #{tpu_custom_call.1} parent=1 // pred_region
      _
    $region25: #{tpu_custom_call.1} parent=1 // pred_fallthru
      _
    // Predicated region
    $region26: #{tpu_custom_call.1} parent=1 // pred_check
      _
    $region27: #{tpu_custom_call.1} parent=1 // pred_check_branch
      %61 = sbr.rel (0) target = $region29
    $region28: #{tpu_custom_call.1} parent=1 // pred_region
      _
    $region29: #{tpu_custom_call.1} parent=1 // pred_fallthru
      _
    // Predicated region
    $region30: #{tpu_custom_call.1} parent=1 // pred_check
      _
    $region31: #{tpu_custom_call.1} parent=1 // pred_check_branch
      %63 = sbr.rel (0) target = $region33
    $region32: #{tpu_custom_call.1} parent=1 // pred_region
      %65 = vsyncadd [#allocation9], 0
      %s66 = sshll.u32 %s8, 4
      %s67 = int_to_ptr.hbm [resolvable:$true] %s66
      %s68 = sshll.u32 [#allocation10], 4
      %s69 = int_to_ptr.vmem [resolvable:$true] %s68
      %74 = dma.hbm_to_vmem [thread:$0]  %s67, 2048, %s69, [#allocation9], 64, 64, 4
    $region33: #{tpu_custom_call.1} parent=1 // pred_fallthru
      _
    // Predicated region
    $region34: #{tpu_custom_call.1} parent=1 // pred_check
      _
    $region35: #{tpu_custom_call.1} parent=1 // pred_check_branch
      %76 = sbr.rel (0) target = $region37
    $region36: #{tpu_custom_call.1} parent=1 // pred_region
      _
    $region37: #{tpu_custom_call.1} parent=1 // pred_fallthru
      _
    // Predicated region
    $region38: #{tpu_custom_call.1} parent=1 // pred_check
      _
    $region39: #{tpu_custom_call.1} parent=1 // pred_check_branch
      %78 = sbr.rel (0) target = $region41
    $region40: #{tpu_custom_call.1} parent=1 // pred_region
      %80 = dma.done [#allocation6], 1024
    $region41: #{tpu_custom_call.1} parent=1 // pred_fallthru
      _
    // Predicated region
    $region42: #{tpu_custom_call.1} parent=1 // pred_check
      _
    $region43: #{tpu_custom_call.1} parent=1 // pred_check_branch
      %82 = sbr.rel (0) target = $region45
    $region44: #{tpu_custom_call.1} parent=1 // pred_region
      %84 = dma.done [#allocation9], 1024
    $region45: #{tpu_custom_call.1} parent=1 // pred_fallthru
      _
    // Predicated region
    $region46: #{tpu_custom_call.1} parent=1 // pred_check
      _
    $region47: #{tpu_custom_call.1} parent=1 // pred_check_branch
      %86 = sbr.rel (0) target = $region49
    $region48: #{tpu_custom_call.1} parent=1 // pred_region
      %88 = dma.done [#allocation9], 2048
    $region49: #{tpu_custom_call.1} parent=1 // pred_fallthru
      _
    %89 = vst [vmem:[#allocation2 + $0x10] sm:$0xff] 0.0
    %90 = vst [vmem:[#allocation2 + $0x18] sm:$0xff] 0.0
    %91 = vst [vmem:[#allocation2 + $0x20] sm:$0xff] 0.0
    %92 = vst [vmem:[#allocation2 + $0x28] sm:$0xff] 0.0
    %93 = vst [vmem:[#allocation2 + $0x30] sm:$0xff] 0.0
    %94 = vst [vmem:[#allocation2 + $0x38] sm:$0xff] 0.0
    %95 = vst [vmem:[#allocation2 + $0x40] sm:$0xff] 0.0
    %96 = vst [vmem:[#allocation2 + $0x48] sm:$0xff] 0.0
    %97 = vst [vmem:[#allocation2 + $0x50] sm:$0xff] 0.0
    %98 = vst [vmem:[#allocation2 + $0x58] sm:$0xff] 0.0
    %99 = vst [vmem:[#allocation2 + $0x60] sm:$0xff] 0.0
    %100 = vst [vmem:[#allocation2 + $0x68] sm:$0xff] 0.0
    %101 = vst [vmem:[#allocation2 + $0x70] sm:$0xff] 0.0
    %102 = vst [vmem:[#allocation2 + $0x78] sm:$0xff] 0.0
    %s103 = sld [smem:[#allocation4]]
    %s104 = scalar_lea.vmem [#allocation5], %s103
    %v105 = vld [vmem:[%s104] sm:$0x1]
    %106 = vst [vmem:[#allocation2] sm:$0x1] %v105
    %s107 = sld [smem:[#allocation4 + $0x1]]
    %s108 = scalar_lea.vmem [#allocation5], %s107
    %v109 = vld [vmem:[%s108] sm:$0x1]
    %110 = vst [vmem:[#allocation2 + $0x1] sm:$0x1] %v109
    %s111 = sld [smem:[#allocation4 + $0x2]]
    %s112 = scalar_lea.vmem [#allocation5], %s111
    %v113 = vld [vmem:[%s112] sm:$0x1]
    %114 = vst [vmem:[#allocation2 + $0x2] sm:$0x1] %v113
    %s115 = sld [smem:[#allocation4 + $0x3]]
    %s116 = scalar_lea.vmem [#allocation5], %s115
    %v117 = vld [vmem:[%s116] sm:$0x1]
    %118 = vst [vmem:[#allocation2 + $0x3] sm:$0x1] %v117
    %s119 = sld [smem:[#allocation4 + $0x4]]
    %s120 = scalar_lea.vmem [#allocation5], %s119
    %v121 = vld [vmem:[%s120] sm:$0x1]
    %122 = vst [vmem:[#allocation2 + $0x4] sm:$0x1] %v121
    %s123 = sld [smem:[#allocation4 + $0x5]]
    %s124 = scalar_lea.vmem [#allocation5], %s123
    %v125 = vld [vmem:[%s124] sm:$0x1]
    %126 = vst [vmem:[#allocation2 + $0x5] sm:$0x1] %v125
    %s127 = sld [smem:[#allocation4 + $0x6]]
    %s128 = scalar_lea.vmem [#allocation5], %s127
    %v129 = vld [vmem:[%s128] sm:$0x1]
    %130 = vst [vmem:[#allocation2 + $0x6] sm:$0x1] %v129
    %s131 = sld [smem:[#allocation4 + $0x7]]
    %s132 = scalar_lea.vmem [#allocation5], %s131
    %v133 = vld [vmem:[%s132] sm:$0x1]
    %134 = vst [vmem:[#allocation2 + $0x7] sm:$0x1] %v133
    %s135 = sld [smem:[#allocation4 + $0x8]]
    %s136 = scalar_lea.vmem [#allocation5], %s135
    %v137 = vld [vmem:[%s136] sm:$0x1]
    %138 = vst [vmem:[#allocation2 + $0x8] sm:$0x1] %v137
    %s139 = sld [smem:[#allocation4 + $0x9]]
    %s140 = scalar_lea.vmem [#allocation5], %s139
    %v141 = vld [vmem:[%s140] sm:$0x1]
    %142 = vst [vmem:[#allocation2 + $0x9] sm:$0x1] %v141
    %s143 = sld [smem:[#allocation4 + $0xa]]
    %s144 = scalar_lea.vmem [#allocation5], %s143
    %v145 = vld [vmem:[%s144] sm:$0x1]
    %146 = vst [vmem:[#allocation2 + $0xa] sm:$0x1] %v145
    %s147 = sld [smem:[#allocation4 + $0xb]]
    %s148 = scalar_lea.vmem [#allocation5], %s147
    %v149 = vld [vmem:[%s148] sm:$0x1]
    %150 = vst [vmem:[#allocation2 + $0xb] sm:$0x1] %v149
    %s151 = sld [smem:[#allocation4 + $0xc]]
    %s152 = scalar_lea.vmem [#allocation5], %s151
    %v153 = vld [vmem:[%s152] sm:$0x1]
    %154 = vst [vmem:[#allocation2 + $0xc] sm:$0x1] %v153
    %s155 = sld [smem:[#allocation4 + $0xd]]
    %s156 = scalar_lea.vmem [#allocation5], %s155
    %v157 = vld [vmem:[%s156] sm:$0x1]
    %158 = vst [vmem:[#allocation2 + $0xd] sm:$0x1] %v157
    %s159 = sld [smem:[#allocation4 + $0xe]]
    %s160 = scalar_lea.vmem [#allocation5], %s159
    %v161 = vld [vmem:[%s160] sm:$0x1]
    %162 = vst [vmem:[#allocation2 + $0xe] sm:$0x1] %v161
    %s163 = sld [smem:[#allocation4 + $0xf]]
    %s164 = scalar_lea.vmem [#allocation5], %s163
    %v165 = vld [vmem:[%s164] sm:$0x1]
    %166 = vst [vmem:[#allocation2 + $0xf] sm:$0x1] %v165
    %v167 = vld [vmem:[#allocation2] sm:$0xff]
    %v168 = vld [vmem:[#allocation2 + $0x8] sm:$0xff]
    %v169 = vld [vmem:[#allocation2 + $0x10] sm:$0xff]
    %v170 = vld [vmem:[#allocation2 + $0x18] sm:$0xff]
    %v171 = vld [vmem:[#allocation2 + $0x20] sm:$0xff]
    %v172 = vld [vmem:[#allocation2 + $0x28] sm:$0xff]
    %v173 = vld [vmem:[#allocation2 + $0x30] sm:$0xff]
    %v174 = vld [vmem:[#allocation2 + $0x38] sm:$0xff]
    %v175 = vld [vmem:[#allocation2 + $0x40] sm:$0xff]
    %v176 = vld [vmem:[#allocation2 + $0x48] sm:$0xff]
    %v177 = vld [vmem:[#allocation2 + $0x50] sm:$0xff]
    %v178 = vld [vmem:[#allocation2 + $0x58] sm:$0xff]
    %v179 = vld [vmem:[#allocation2 + $0x60] sm:$0xff]
    %v180 = vld [vmem:[#allocation2 + $0x68] sm:$0xff]
    %v181 = vld [vmem:[#allocation2 + $0x70] sm:$0xff]
    %v182 = vld [vmem:[#allocation2 + $0x78] sm:$0xff]
    %v183 = vpack.c.bf16 %v167, %v167
    %v184 = vpack.c.bf16 %v168, %v168
    %v185 = vpack.c.bf16 %v169, %v169
    %v186 = vpack.c.bf16 %v170, %v170
    %v187 = vpack.c.bf16 %v171, %v171
    %v188 = vpack.c.bf16 %v172, %v172
    %v189 = vpack.c.bf16 %v173, %v173
    %v190 = vpack.c.bf16 %v174, %v174
    %v191 = vpack.c.bf16 %v175, %v175
    %v192 = vpack.c.bf16 %v176, %v176
    %v193 = vpack.c.bf16 %v177, %v177
    %v194 = vpack.c.bf16 %v178, %v178
    %v195 = vpack.c.bf16 %v179, %v179
    %v196 = vpack.c.bf16 %v180, %v180
    %v197 = vpack.c.bf16 %v181, %v181
    %v198 = vpack.c.bf16 %v182, %v182
    %v199 = vld [vmem:[#allocation8] sm:$0xf]
    %v200 = vld [vmem:[#allocation8 + $0x4] sm:$0xf]
    %v201 = vld [vmem:[#allocation8 + $0x8] sm:$0xf]
    %v202 = vld [vmem:[#allocation8 + $0xc] sm:$0xf]
    %v203 = vld [vmem:[#allocation8 + $0x10] sm:$0xf]
    %v204 = vld [vmem:[#allocation8 + $0x14] sm:$0xf]
    %v205 = vld [vmem:[#allocation8 + $0x18] sm:$0xf]
    %v206 = vld [vmem:[#allocation8 + $0x1c] sm:$0xf]
    %v207 = vld [vmem:[#allocation8 + $0x20] sm:$0xf]
    %v208 = vld [vmem:[#allocation8 + $0x24] sm:$0xf]
    %v209 = vld [vmem:[#allocation8 + $0x28] sm:$0xf]
    %v210 = vld [vmem:[#allocation8 + $0x2c] sm:$0xf]
    %v211 = vld [vmem:[#allocation8 + $0x30] sm:$0xf]
    %v212 = vld [vmem:[#allocation8 + $0x34] sm:$0xf]
    %v213 = vld [vmem:[#allocation8 + $0x38] sm:$0xf]
    %v214 = vld [vmem:[#allocation8 + $0x3c] sm:$0xf]
    %v231 = vunpack.c.l.b16 %v199
    %v232 = vunpack.c.l.b16 %v200
    %v233 = vunpack.c.l.b16 %v201
    %v234 = vunpack.c.l.b16 %v202
    %v235 = vunpack.c.l.b16 %v203
    %v236 = vunpack.c.l.b16 %v204
    %v237 = vunpack.c.l.b16 %v205
    %v238 = vunpack.c.l.b16 %v206
    %v239 = vunpack.c.l.b16 %v207
    %v240 = vunpack.c.l.b16 %v208
    %v241 = vunpack.c.l.b16 %v209
    %v242 = vunpack.c.l.b16 %v210
    %v243 = vunpack.c.l.b16 %v211
    %v244 = vunpack.c.l.b16 %v212
    %v245 = vunpack.c.l.b16 %v213
    %v246 = vunpack.c.l.b16 %v214
    %v247 = vpack.c.b16 %v232, %v231
    %v248 = vpack.c.b16 %v234, %v233
    %v249 = vpack.c.b16 %v236, %v235
    %v250 = vpack.c.b16 %v238, %v237
    %v251 = vpack.c.b16 %v240, %v239
    %v252 = vpack.c.b16 %v242, %v241
    %v253 = vpack.c.b16 %v244, %v243
    %v254 = vpack.c.b16 %v246, %v245
    %v279 = vunpack.c.l.b16 %v183
    %v280 = vunpack.c.l.b16 %v184
    %v281 = vunpack.c.l.b16 %v185
    %v282 = vunpack.c.l.b16 %v186
    %v283 = vunpack.c.l.b16 %v187
    %v284 = vunpack.c.l.b16 %v188
    %v285 = vunpack.c.l.b16 %v189
    %v286 = vunpack.c.l.b16 %v190
    %v287 = vunpack.c.l.b16 %v191
    %v288 = vunpack.c.l.b16 %v192
    %v289 = vunpack.c.l.b16 %v193
    %v290 = vunpack.c.l.b16 %v194
    %v291 = vunpack.c.l.b16 %v195
    %v292 = vunpack.c.l.b16 %v196
    %v293 = vunpack.c.l.b16 %v197
    %v294 = vunpack.c.l.b16 %v198
    %v295 = vpack.c.b16 %v280, %v279
    %v296 = vpack.c.b16 %v282, %v281
    %v297 = vpack.c.b16 %v284, %v283
    %v298 = vpack.c.b16 %v286, %v285
    %v299 = vpack.c.b16 %v288, %v287
    %v300 = vpack.c.b16 %v290, %v289
    %v301 = vpack.c.b16 %v292, %v291
    %v302 = vpack.c.b16 %v294, %v293
    %311 = vmatpush.bf16.msra.mxu0 %v302
    %312 = vmatpush.bf16.msra.mxu0 %v301
    %313 = vmatpush.bf16.msra.mxu0 %v300
    %314 = vmatpush.bf16.msra.mxu0 %v299
    %315 = vmatpush.bf16.msra.mxu0 %v298
    %316 = vmatpush.bf16.msra.mxu0 %v297
    %317 = vmatpush.bf16.msra.mxu0 %v296
    %318 = vmatpush.bf16.msra.mxu0 %v295
    %319 = vmatmul.bf16.gmra.mxu0 %v247
    %v320 = vpop.f32.mrf.mxu0
    %v321 = vadd.f32 0.0, %v320
    %v322 = vpop.f32.mrf.mxu0
    %v323 = vadd.f32 0.0, %v322
    %324 = vmatmul.bf16.gmra.mxu0 %v248
    %v325 = vpop.f32.mrf.mxu0
    %v326 = vadd.f32 0.0, %v325
    %v327 = vpop.f32.mrf.mxu0
    %v328 = vadd.f32 0.0, %v327
    %329 = vmatmul.bf16.gmra.mxu0 %v249
    %v330 = vpop.f32.mrf.mxu0
    %v331 = vadd.f32 0.0, %v330
    %v332 = vpop.f32.mrf.mxu0
    %v333 = vadd.f32 0.0, %v332
    %334 = vmatmul.bf16.gmra.mxu0 %v250
    %v335 = vpop.f32.mrf.mxu0
    %v336 = vadd.f32 0.0, %v335
    %v337 = vpop.f32.mrf.mxu0
    %v338 = vadd.f32 0.0, %v337
    %339 = vmatmul.bf16.gmra.mxu0 %v251
    %v340 = vpop.f32.mrf.mxu0
    %v341 = vadd.f32 0.0, %v340
    %v342 = vpop.f32.mrf.mxu0
    %v343 = vadd.f32 0.0, %v342
    %344 = vmatmul.bf16.gmra.mxu0 %v252
    %v345 = vpop.f32.mrf.mxu0
    %v346 = vadd.f32 0.0, %v345
    %v347 = vpop.f32.mrf.mxu0
    %v348 = vadd.f32 0.0, %v347
    %349 = vmatmul.bf16.gmra.mxu0 %v253
    %v350 = vpop.f32.mrf.mxu0
    %v351 = vadd.f32 0.0, %v350
    %v352 = vpop.f32.mrf.mxu0
    %v353 = vadd.f32 0.0, %v352
    %354 = vmatmul.bf16.gmra.mxu0 %v254
    %v355 = vpop.f32.mrf.mxu0
    %v356 = vadd.f32 0.0, %v355
    %v357 = vpop.f32.mrf.mxu0
    %v358 = vadd.f32 0.0, %v357
    %359 = vdwg.mxu0
    %v360 = vld [vmem:[%s3] sm:$0xff]
    %v361 = vld [vmem:[%s3 + $0x8] sm:$0xff]
    %v362 = vld [vmem:[%s3 + $0x10] sm:$0xff]
    %v363 = vld [vmem:[%s3 + $0x18] sm:$0xff]
    %v364 = vld [vmem:[%s3 + $0x20] sm:$0xff]
    %v365 = vld [vmem:[%s3 + $0x28] sm:$0xff]
    %v366 = vld [vmem:[%s3 + $0x30] sm:$0xff]
    %v367 = vld [vmem:[%s3 + $0x38] sm:$0xff]
    %v368 = vld [vmem:[%s3 + $0x40] sm:$0xff]
    %v369 = vld [vmem:[%s3 + $0x48] sm:$0xff]
    %v370 = vld [vmem:[%s3 + $0x50] sm:$0xff]
    %v371 = vld [vmem:[%s3 + $0x58] sm:$0xff]
    %v372 = vld [vmem:[%s3 + $0x60] sm:$0xff]
    %v373 = vld [vmem:[%s3 + $0x68] sm:$0xff]
    %v374 = vld [vmem:[%s3 + $0x70] sm:$0xff]
    %v375 = vld [vmem:[%s3 + $0x78] sm:$0xff]
    %377 = vset.pattern.permute.xlu0 0
    %378 = vperm.xlu0 %377, %v360
    %v379 = vpop.permute.xlu0 %378
    %382 = vset.pattern.permute.xlu0 0
    %383 = vperm.xlu0 %382, %v361
    %v384 = vpop.permute.xlu0 %383
    %387 = vset.pattern.permute.xlu0 0
    %388 = vperm.xlu0 %387, %v362
    %v389 = vpop.permute.xlu0 %388
    %392 = vset.pattern.permute.xlu0 0
    %393 = vperm.xlu0 %392, %v363
    %v394 = vpop.permute.xlu0 %393
    %397 = vset.pattern.permute.xlu0 0
    %398 = vperm.xlu0 %397, %v364
    %v399 = vpop.permute.xlu0 %398
    %402 = vset.pattern.permute.xlu0 0
    %403 = vperm.xlu0 %402, %v365
    %v404 = vpop.permute.xlu0 %403
    %407 = vset.pattern.permute.xlu0 0
    %408 = vperm.xlu0 %407, %v366
    %v409 = vpop.permute.xlu0 %408
    %412 = vset.pattern.permute.xlu0 0
    %413 = vperm.xlu0 %412, %v367
    %v414 = vpop.permute.xlu0 %413
    %417 = vset.pattern.permute.xlu0 0
    %418 = vperm.xlu0 %417, %v368
    %v419 = vpop.permute.xlu0 %418
    %422 = vset.pattern.permute.xlu0 0
    %423 = vperm.xlu0 %422, %v369
    %v424 = vpop.permute.xlu0 %423
    %427 = vset.pattern.permute.xlu0 0
    %428 = vperm.xlu0 %427, %v370
    %v429 = vpop.permute.xlu0 %428
    %432 = vset.pattern.permute.xlu0 0
    %433 = vperm.xlu0 %432, %v371
    %v434 = vpop.permute.xlu0 %433
    %437 = vset.pattern.permute.xlu0 0
    %438 = vperm.xlu0 %437, %v372
    %v439 = vpop.permute.xlu0 %438
    %442 = vset.pattern.permute.xlu0 0
    %443 = vperm.xlu0 %442, %v373
    %v444 = vpop.permute.xlu0 %443
    %447 = vset.pattern.permute.xlu0 0
    %448 = vperm.xlu0 %447, %v374
    %v449 = vpop.permute.xlu0 %448
    %452 = vset.pattern.permute.xlu0 0
    %453 = vperm.xlu0 %452, %v375
    %v454 = vpop.permute.xlu0 %453
    %v456 = vmul.f32 %v321, %v379
    %v457 = vmul.f32 %v323, %v384
    %v458 = vmul.f32 %v326, %v389
    %v459 = vmul.f32 %v328, %v394
    %v460 = vmul.f32 %v331, %v399
    %v461 = vmul.f32 %v333, %v404
    %v462 = vmul.f32 %v336, %v409
    %v463 = vmul.f32 %v338, %v414
    %v464 = vmul.f32 %v341, %v419
    %v465 = vmul.f32 %v343, %v424
    %v466 = vmul.f32 %v346, %v429
    %v467 = vmul.f32 %v348, %v434
    %v468 = vmul.f32 %v351, %v439
    %v469 = vmul.f32 %v353, %v444
    %v470 = vmul.f32 %v356, %v449
    %v471 = vmul.f32 %v358, %v454
    %v472 = vpack.c.bf16 %v456, %v456
    %v473 = vpack.c.bf16 %v457, %v457
    %v474 = vpack.c.bf16 %v458, %v458
    %v475 = vpack.c.bf16 %v459, %v459
    %v476 = vpack.c.bf16 %v460, %v460
    %v477 = vpack.c.bf16 %v461, %v461
    %v478 = vpack.c.bf16 %v462, %v462
    %v479 = vpack.c.bf16 %v463, %v463
    %v480 = vpack.c.bf16 %v464, %v464
    %v481 = vpack.c.bf16 %v465, %v465
    %v482 = vpack.c.bf16 %v466, %v466
    %v483 = vpack.c.bf16 %v467, %v467
    %v484 = vpack.c.bf16 %v468, %v468
    %v485 = vpack.c.bf16 %v469, %v469
    %v486 = vpack.c.bf16 %v470, %v470
    %v487 = vpack.c.bf16 %v471, %v471
    %v504 = vunpack.c.l.b16 %v472
    %v505 = vunpack.c.l.b16 %v473
    %v506 = vunpack.c.l.b16 %v474
    %v507 = vunpack.c.l.b16 %v475
    %v508 = vunpack.c.l.b16 %v476
    %v509 = vunpack.c.l.b16 %v477
    %v510 = vunpack.c.l.b16 %v478
    %v511 = vunpack.c.l.b16 %v479
    %v512 = vunpack.c.l.b16 %v480
    %v513 = vunpack.c.l.b16 %v481
    %v514 = vunpack.c.l.b16 %v482
    %v515 = vunpack.c.l.b16 %v483
    %v516 = vunpack.c.l.b16 %v484
    %v517 = vunpack.c.l.b16 %v485
    %v518 = vunpack.c.l.b16 %v486
    %v519 = vunpack.c.l.b16 %v487
    %v520 = vpack.c.b16 %v505, %v504
    %v521 = vpack.c.b16 %v507, %v506
    %v522 = vpack.c.b16 %v509, %v508
    %v523 = vpack.c.b16 %v511, %v510
    %v524 = vpack.c.b16 %v513, %v512
    %v525 = vpack.c.b16 %v515, %v514
    %v526 = vpack.c.b16 %v517, %v516
    %v527 = vpack.c.b16 %v519, %v518
    %v536 = vld [vmem:[%s4] sm:$0xf]
    %v537 = vld [vmem:[%s4 + $0x4] sm:$0xf]
    %v538 = vld [vmem:[%s4 + $0x8] sm:$0xf]
    %v539 = vld [vmem:[%s4 + $0xc] sm:$0xf]
    %v540 = vld [vmem:[%s4 + $0x10] sm:$0xf]
    %v541 = vld [vmem:[%s4 + $0x14] sm:$0xf]
    %v542 = vld [vmem:[%s4 + $0x18] sm:$0xf]
    %v543 = vld [vmem:[%s4 + $0x1c] sm:$0xf]
    %v544 = vld [vmem:[%s4 + $0x20] sm:$0xf]
    %v545 = vld [vmem:[%s4 + $0x24] sm:$0xf]
    %v546 = vld [vmem:[%s4 + $0x28] sm:$0xf]
    %v547 = vld [vmem:[%s4 + $0x2c] sm:$0xf]
    %v548 = vld [vmem:[%s4 + $0x30] sm:$0xf]
    %v549 = vld [vmem:[%s4 + $0x34] sm:$0xf]
    %v550 = vld [vmem:[%s4 + $0x38] sm:$0xf]
    %v551 = vld [vmem:[%s4 + $0x3c] sm:$0xf]
    %v552 = vld [vmem:[%s4 + $0x40] sm:$0xf]
    %v553 = vld [vmem:[%s4 + $0x44] sm:$0xf]
    %v554 = vld [vmem:[%s4 + $0x48] sm:$0xf]
    %v555 = vld [vmem:[%s4 + $0x4c] sm:$0xf]
    %v556 = vld [vmem:[%s4 + $0x50] sm:$0xf]
    %v557 = vld [vmem:[%s4 + $0x54] sm:$0xf]
    %v558 = vld [vmem:[%s4 + $0x58] sm:$0xf]
    %v559 = vld [vmem:[%s4 + $0x5c] sm:$0xf]
    %v560 = vld [vmem:[%s4 + $0x60] sm:$0xf]
    %v561 = vld [vmem:[%s4 + $0x64] sm:$0xf]
    %v562 = vld [vmem:[%s4 + $0x68] sm:$0xf]
    %v563 = vld [vmem:[%s4 + $0x6c] sm:$0xf]
    %v564 = vld [vmem:[%s4 + $0x70] sm:$0xf]
    %v565 = vld [vmem:[%s4 + $0x74] sm:$0xf]
    %v566 = vld [vmem:[%s4 + $0x78] sm:$0xf]
    %v567 = vld [vmem:[%s4 + $0x7c] sm:$0xf]
    %v568 = vld [vmem:[%s5] sm:$0x1]
    %v570 = vperm.slane %v568, 0
    %v604 = vunpack.c.l.b16 %v536
    %v605 = vunpack.c.l.b16 %v537
    %v606 = vunpack.c.l.b16 %v538
    %v607 = vunpack.c.l.b16 %v539
    %v608 = vunpack.c.l.b16 %v540
    %v609 = vunpack.c.l.b16 %v541
    %v610 = vunpack.c.l.b16 %v542
    %v611 = vunpack.c.l.b16 %v543
    %v612 = vunpack.c.l.b16 %v544
    %v613 = vunpack.c.l.b16 %v545
    %v614 = vunpack.c.l.b16 %v546
    %v615 = vunpack.c.l.b16 %v547
    %v616 = vunpack.c.l.b16 %v548
    %v617 = vunpack.c.l.b16 %v549
    %v618 = vunpack.c.l.b16 %v550
    %v619 = vunpack.c.l.b16 %v551
    %v620 = vunpack.c.l.b16 %v552
    %v621 = vunpack.c.l.b16 %v553
    %v622 = vunpack.c.l.b16 %v554
    %v623 = vunpack.c.l.b16 %v555
    %v624 = vunpack.c.l.b16 %v556
    %v625 = vunpack.c.l.b16 %v557
    %v626 = vunpack.c.l.b16 %v558
    %v627 = vunpack.c.l.b16 %v559
    %v628 = vunpack.c.l.b16 %v560
    %v629 = vunpack.c.l.b16 %v561
    %v630 = vunpack.c.l.b16 %v562
    %v631 = vunpack.c.l.b16 %v563
    %v632 = vunpack.c.l.b16 %v564
    %v633 = vunpack.c.l.b16 %v565
    %v634 = vunpack.c.l.b16 %v566
    %v635 = vunpack.c.l.b16 %v567
    %v636 = vpack.c.b16 %v605, %v604
    %v637 = vpack.c.b16 %v607, %v606
    %v638 = vpack.c.b16 %v609, %v608
    %v639 = vpack.c.b16 %v611, %v610
    %v640 = vpack.c.b16 %v613, %v612
    %v641 = vpack.c.b16 %v615, %v614
    %v642 = vpack.c.b16 %v617, %v616
    %v643 = vpack.c.b16 %v619, %v618
    %v644 = vpack.c.b16 %v621, %v620
    %v645 = vpack.c.b16 %v623, %v622
    %v646 = vpack.c.b16 %v625, %v624
    %v647 = vpack.c.b16 %v627, %v626
    %v648 = vpack.c.b16 %v629, %v628
    %v649 = vpack.c.b16 %v631, %v630
    %v650 = vpack.c.b16 %v633, %v632
    %v651 = vpack.c.b16 %v635, %v634
    %668 = vmatpush.bf16.msra.mxu0 %v643
    %669 = vmatpush.bf16.msra.mxu0 %v642
    %670 = vmatpush.bf16.msra.mxu0 %v641
    %671 = vmatpush.bf16.msra.mxu0 %v640
    %672 = vmatpush.bf16.msra.mxu0 %v639
    %673 = vmatpush.bf16.msra.mxu0 %v638
    %674 = vmatpush.bf16.msra.mxu0 %v637
    %675 = vmatpush.bf16.msra.mxu0 %v636
    %676 = vmatmul.bf16.gmra.mxu0 %v295
    %v677 = vpop.f32.mrf.mxu0
    %v678 = vadd.f32 %v570, %v677
    %v679 = vpop.f32.mrf.mxu0
    %v680 = vadd.f32 %v570, %v679
    %681 = vmatmul.bf16.gmra.mxu0 %v296
    %v682 = vpop.f32.mrf.mxu0
    %v683 = vadd.f32 %v570, %v682
    %v684 = vpop.f32.mrf.mxu0
    %v685 = vadd.f32 %v570, %v684
    %686 = vmatmul.bf16.gmra.mxu0 %v297
    %v687 = vpop.f32.mrf.mxu0
    %v688 = vadd.f32 %v570, %v687
    %v689 = vpop.f32.mrf.mxu0
    %v690 = vadd.f32 %v570, %v689
    %691 = vmatmul.bf16.gmra.mxu0 %v298
    %v692 = vpop.f32.mrf.mxu0
    %v693 = vadd.f32 %v570, %v692
    %v694 = vpop.f32.mrf.mxu0
    %v695 = vadd.f32 %v570, %v694
    %696 = vmatmul.bf16.gmra.mxu0 %v299
    %v697 = vpop.f32.mrf.mxu0
    %v698 = vadd.f32 %v570, %v697
    %v699 = vpop.f32.mrf.mxu0
    %v700 = vadd.f32 %v570, %v699
    %701 = vmatmul.bf16.gmra.mxu0 %v300
    %v702 = vpop.f32.mrf.mxu0
    %v703 = vadd.f32 %v570, %v702
    %v704 = vpop.f32.mrf.mxu0
    %v705 = vadd.f32 %v570, %v704
    %706 = vmatmul.bf16.gmra.mxu0 %v301
    %v707 = vpop.f32.mrf.mxu0
    %v708 = vadd.f32 %v570, %v707
    %v709 = vpop.f32.mrf.mxu0
    %v710 = vadd.f32 %v570, %v709
    %711 = vmatmul.bf16.gmra.mxu0 %v302
    %v712 = vpop.f32.mrf.mxu0
    %v713 = vadd.f32 %v570, %v712
    %v714 = vpop.f32.mrf.mxu0
    %v715 = vadd.f32 %v570, %v714
    %716 = vdwg.mxu0
    %717 = vmatpush.bf16.msra.mxu0 %v651
    %718 = vmatpush.bf16.msra.mxu0 %v650
    %719 = vmatpush.bf16.msra.mxu0 %v649
    %720 = vmatpush.bf16.msra.mxu0 %v648
    %721 = vmatpush.bf16.msra.mxu0 %v647
    %722 = vmatpush.bf16.msra.mxu0 %v646
    %723 = vmatpush.bf16.msra.mxu0 %v645
    %724 = vmatpush.bf16.msra.mxu0 %v644
    %725 = vmatmul.bf16.gmra.mxu0 %v520
    %v726 = vpop.f32.mrf.mxu0
    %v727 = vadd.f32 %v678, %v726
    %v728 = vpop.f32.mrf.mxu0
    %v729 = vadd.f32 %v680, %v728
    %730 = vmatmul.bf16.gmra.mxu0 %v521
    %v731 = vpop.f32.mrf.mxu0
    %v732 = vadd.f32 %v683, %v731
    %v733 = vpop.f32.mrf.mxu0
    %v734 = vadd.f32 %v685, %v733
    %735 = vmatmul.bf16.gmra.mxu0 %v522
    %v736 = vpop.f32.mrf.mxu0
    %v737 = vadd.f32 %v688, %v736
    %v738 = vpop.f32.mrf.mxu0
    %v739 = vadd.f32 %v690, %v738
    %740 = vmatmul.bf16.gmra.mxu0 %v523
    %v741 = vpop.f32.mrf.mxu0
    %v742 = vadd.f32 %v693, %v741
    %v743 = vpop.f32.mrf.mxu0
    %v744 = vadd.f32 %v695, %v743
    %745 = vmatmul.bf16.gmra.mxu0 %v524
    %v746 = vpop.f32.mrf.mxu0
    %v747 = vadd.f32 %v698, %v746
    %v748 = vpop.f32.mrf.mxu0
    %v749 = vadd.f32 %v700, %v748
    %750 = vmatmul.bf16.gmra.mxu0 %v525
    %v751 = vpop.f32.mrf.mxu0
    %v752 = vadd.f32 %v703, %v751
    %v753 = vpop.f32.mrf.mxu0
    %v754 = vadd.f32 %v705, %v753
    %755 = vmatmul.bf16.gmra.mxu0 %v526
    %v756 = vpop.f32.mrf.mxu0
    %v757 = vadd.f32 %v708, %v756
    %v758 = vpop.f32.mrf.mxu0
    %v759 = vadd.f32 %v710, %v758
    %760 = vmatmul.bf16.gmra.mxu0 %v527
    %v761 = vpop.f32.mrf.mxu0
    %v762 = vadd.f32 %v713, %v761
    %v763 = vpop.f32.mrf.mxu0
    %v764 = vadd.f32 %v715, %v763
    %765 = vdwg.mxu0
    %v766 = vmax.f32 %v727, 0.0
    %v767 = vmax.f32 %v729, 0.0
    %v768 = vmax.f32 %v732, 0.0
    %v769 = vmax.f32 %v734, 0.0
    %v770 = vmax.f32 %v737, 0.0
    %v771 = vmax.f32 %v739, 0.0
    %v772 = vmax.f32 %v742, 0.0
    %v773 = vmax.f32 %v744, 0.0
    %v774 = vmax.f32 %v747, 0.0
    %v775 = vmax.f32 %v749, 0.0
    %v776 = vmax.f32 %v752, 0.0
    %v777 = vmax.f32 %v754, 0.0
    %v778 = vmax.f32 %v757, 0.0
    %v779 = vmax.f32 %v759, 0.0
    %v780 = vmax.f32 %v762, 0.0
    %v781 = vmax.f32 %v764, 0.0
    %v782 = vpack.c.bf16 %v766, %v766
    %v783 = vpack.c.bf16 %v767, %v767
    %v784 = vpack.c.bf16 %v768, %v768
    %v785 = vpack.c.bf16 %v769, %v769
    %v786 = vpack.c.bf16 %v770, %v770
    %v787 = vpack.c.bf16 %v771, %v771
    %v788 = vpack.c.bf16 %v772, %v772
    %v789 = vpack.c.bf16 %v773, %v773
    %v790 = vpack.c.bf16 %v774, %v774
    %v791 = vpack.c.bf16 %v775, %v775
    %v792 = vpack.c.bf16 %v776, %v776
    %v793 = vpack.c.bf16 %v777, %v777
    %v794 = vpack.c.bf16 %v778, %v778
    %v795 = vpack.c.bf16 %v779, %v779
    %v796 = vpack.c.bf16 %v780, %v780
    %v797 = vpack.c.bf16 %v781, %v781
    %v798 = vld [vmem:[%s6] sm:$0xf]
    %v799 = vld [vmem:[%s6 + $0x4] sm:$0xf]
    %v802 = vunpack.c.l.b16 %v798
    %v803 = vunpack.c.l.b16 %v799
    %v804 = vpack.c.b16 %v803, %v802
    %v822 = vunpack.c.l.b16 %v782
    %v823 = vunpack.c.l.b16 %v783
    %v824 = vunpack.c.l.b16 %v784
    %v825 = vunpack.c.l.b16 %v785
    %v826 = vunpack.c.l.b16 %v786
    %v827 = vunpack.c.l.b16 %v787
    %v828 = vunpack.c.l.b16 %v788
    %v829 = vunpack.c.l.b16 %v789
    %v830 = vunpack.c.l.b16 %v790
    %v831 = vunpack.c.l.b16 %v791
    %v832 = vunpack.c.l.b16 %v792
    %v833 = vunpack.c.l.b16 %v793
    %v834 = vunpack.c.l.b16 %v794
    %v835 = vunpack.c.l.b16 %v795
    %v836 = vunpack.c.l.b16 %v796
    %v837 = vunpack.c.l.b16 %v797
    %v838 = vpack.c.b16 %v823, %v822
    %v839 = vpack.c.b16 %v825, %v824
    %v840 = vpack.c.b16 %v827, %v826
    %v841 = vpack.c.b16 %v829, %v828
    %v842 = vpack.c.b16 %v831, %v830
    %v843 = vpack.c.b16 %v833, %v832
    %v844 = vpack.c.b16 %v835, %v834
    %v845 = vpack.c.b16 %v837, %v836
    %854 = vmatpush.bf16.msra.mxu0 %v845
    %855 = vmatpush.bf16.msra.mxu0 %v844
    %856 = vmatpush.bf16.msra.mxu0 %v843
    %857 = vmatpush.bf16.msra.mxu0 %v842
    %858 = vmatpush.bf16.msra.mxu0 %v841
    %859 = vmatpush.bf16.msra.mxu0 %v840
    %860 = vmatpush.bf16.msra.mxu0 %v839
    %861 = vmatpush.bf16.msra.mxu0 %v838
    %862 = vmatmul.bf16.gmra.mxu0 %v804
    %v863 = vpop.f32.mrf.mxu0
    %v864 = vadd.f32 0.0, %v863
    %v865 = vpop.f32.mrf.mxu0
    %v866 = vadd.f32 0.0, %v865
    %867 = vdwg.mxu0
    %v868 = vld [vmem:[%s7] sm:$0xff]
    %v869 = vld [vmem:[%s7 + $0x8] sm:$0xff]
    %871 = vset.pattern.permute.xlu0 0
    %872 = vperm.xlu0 %871, %v868
    %v873 = vpop.permute.xlu0 %872
    %876 = vset.pattern.permute.xlu0 0
    %877 = vperm.xlu0 %876, %v869
    %v878 = vpop.permute.xlu0 %877
    %v880 = vmul.f32 %v864, %v873
    %v881 = vmul.f32 %v866, %v878
    %v882 = vpack.c.bf16 %v880, %v880
    %v883 = vpack.c.bf16 %v881, %v881
    %v886 = vunpack.c.l.b16 %v882
    %v887 = vunpack.c.l.b16 %v883
    %v888 = vpack.c.b16 %v887, %v886
    %v890 = vld [vmem:[#allocation10] sm:$0xf]
    %v891 = vld [vmem:[#allocation10 + $0x4] sm:$0xf]
    %v892 = vld [vmem:[#allocation10 + $0x8] sm:$0xf]
    %v893 = vld [vmem:[#allocation10 + $0xc] sm:$0xf]
    %v894 = vld [vmem:[#allocation10 + $0x10] sm:$0xf]
    %v895 = vld [vmem:[#allocation10 + $0x14] sm:$0xf]
    %v896 = vld [vmem:[#allocation10 + $0x18] sm:$0xf]
    %v897 = vld [vmem:[#allocation10 + $0x1c] sm:$0xf]
    %v898 = vld [vmem:[#allocation10 + $0x20] sm:$0xf]
    %v899 = vld [vmem:[#allocation10 + $0x24] sm:$0xf]
    %v900 = vld [vmem:[#allocation10 + $0x28] sm:$0xf]
    %v901 = vld [vmem:[#allocation10 + $0x2c] sm:$0xf]
    %v902 = vld [vmem:[#allocation10 + $0x30] sm:$0xf]
    %v903 = vld [vmem:[#allocation10 + $0x34] sm:$0xf]
    %v904 = vld [vmem:[#allocation10 + $0x38] sm:$0xf]
    %v905 = vld [vmem:[#allocation10 + $0x3c] sm:$0xf]
    %v906 = vld [vmem:[#allocation10 + $0x40] sm:$0xf]
    %v907 = vld [vmem:[#allocation10 + $0x44] sm:$0xf]
    %v908 = vld [vmem:[#allocation10 + $0x48] sm:$0xf]
    %v909 = vld [vmem:[#allocation10 + $0x4c] sm:$0xf]
    %v910 = vld [vmem:[#allocation10 + $0x50] sm:$0xf]
    %v911 = vld [vmem:[#allocation10 + $0x54] sm:$0xf]
    %v912 = vld [vmem:[#allocation10 + $0x58] sm:$0xf]
    %v913 = vld [vmem:[#allocation10 + $0x5c] sm:$0xf]
    %v914 = vld [vmem:[#allocation10 + $0x60] sm:$0xf]
    %v915 = vld [vmem:[#allocation10 + $0x64] sm:$0xf]
    %v916 = vld [vmem:[#allocation10 + $0x68] sm:$0xf]
    %v917 = vld [vmem:[#allocation10 + $0x6c] sm:$0xf]
    %v918 = vld [vmem:[#allocation10 + $0x70] sm:$0xf]
    %v919 = vld [vmem:[#allocation10 + $0x74] sm:$0xf]
    %v920 = vld [vmem:[#allocation10 + $0x78] sm:$0xf]
    %v921 = vld [vmem:[#allocation10 + $0x7c] sm:$0xf]
    %v922 = vld [vmem:[%s9] sm:$0x1]
    %v924 = vperm.slane %v922, 0
    %v958 = vunpack.c.l.b16 %v890
    %v959 = vunpack.c.l.b16 %v891
    %v960 = vunpack.c.l.b16 %v892
    %v961 = vunpack.c.l.b16 %v893
    %v962 = vunpack.c.l.b16 %v894
    %v963 = vunpack.c.l.b16 %v895
    %v964 = vunpack.c.l.b16 %v896
    %v965 = vunpack.c.l.b16 %v897
    %v966 = vunpack.c.l.b16 %v898
    %v967 = vunpack.c.l.b16 %v899
    %v968 = vunpack.c.l.b16 %v900
    %v969 = vunpack.c.l.b16 %v901
    %v970 = vunpack.c.l.b16 %v902
    %v971 = vunpack.c.l.b16 %v903
    %v972 = vunpack.c.l.b16 %v904
    %v973 = vunpack.c.l.b16 %v905
    %v974 = vunpack.c.l.b16 %v906
    %v975 = vunpack.c.l.b16 %v907
    %v976 = vunpack.c.l.b16 %v908
    %v977 = vunpack.c.l.b16 %v909
    %v978 = vunpack.c.l.b16 %v910
    %v979 = vunpack.c.l.b16 %v911
    %v980 = vunpack.c.l.b16 %v912
    %v981 = vunpack.c.l.b16 %v913
    %v982 = vunpack.c.l.b16 %v914
    %v983 = vunpack.c.l.b16 %v915
    %v984 = vunpack.c.l.b16 %v916
    %v985 = vunpack.c.l.b16 %v917
    %v986 = vunpack.c.l.b16 %v918
    %v987 = vunpack.c.l.b16 %v919
    %v988 = vunpack.c.l.b16 %v920
    %v989 = vunpack.c.l.b16 %v921
    %v990 = vpack.c.b16 %v959, %v958
    %v991 = vpack.c.b16 %v961, %v960
    %v992 = vpack.c.b16 %v963, %v962
    %v993 = vpack.c.b16 %v965, %v964
    %v994 = vpack.c.b16 %v967, %v966
    %v995 = vpack.c.b16 %v969, %v968
    %v996 = vpack.c.b16 %v971, %v970
    %v997 = vpack.c.b16 %v973, %v972
    %v998 = vpack.c.b16 %v975, %v974
    %v999 = vpack.c.b16 %v977, %v976
    %v1000 = vpack.c.b16 %v979, %v978
    %v1001 = vpack.c.b16 %v981, %v980
    %v1002 = vpack.c.b16 %v983, %v982
    %v1003 = vpack.c.b16 %v985, %v984
    %v1004 = vpack.c.b16 %v987, %v986
    %v1005 = vpack.c.b16 %v989, %v988
    %1022 = vmatpush.bf16.msra.mxu0 %v997
    %1023 = vmatpush.bf16.msra.mxu0 %v996
    %1024 = vmatpush.bf16.msra.mxu0 %v995
    %1025 = vmatpush.bf16.msra.mxu0 %v994
    %1026 = vmatpush.bf16.msra.mxu0 %v993
    %1027 = vmatpush.bf16.msra.mxu0 %v992
    %1028 = vmatpush.bf16.msra.mxu0 %v991
    %1029 = vmatpush.bf16.msra.mxu0 %v990
    %1030 = vmatmul.bf16.gmra.mxu0 %v838
    %v1031 = vpop.f32.mrf.mxu0
    %v1032 = vadd.f32 %v924, %v1031
    %v1033 = vpop.f32.mrf.mxu0
    %v1034 = vadd.f32 %v924, %v1033
    %1035 = vdwg.mxu0
    %1036 = vmatpush.bf16.msra.mxu0 %v1005
    %1037 = vmatpush.bf16.msra.mxu0 %v1004
    %1038 = vmatpush.bf16.msra.mxu0 %v1003
    %1039 = vmatpush.bf16.msra.mxu0 %v1002
    %1040 = vmatpush.bf16.msra.mxu0 %v1001
    %1041 = vmatpush.bf16.msra.mxu0 %v1000
    %1042 = vmatpush.bf16.msra.mxu0 %v999
    %1043 = vmatpush.bf16.msra.mxu0 %v998
    %1044 = vmatmul.bf16.gmra.mxu0 %v888
    %v1045 = vpop.f32.mrf.mxu0
    %v1046 = vadd.f32 %v1032, %v1045
    %v1047 = vpop.f32.mrf.mxu0
    %v1048 = vadd.f32 %v1034, %v1047
    %1049 = vdwg.mxu0
    %1050 = vst [vmem:[#allocation11] sm:$0xff] %v1046
    %1051 = vst [vmem:[#allocation11 + $0x8] sm:$0xff] %v1048
    // Predicated region
    $region50: #{tpu_custom_call.1} parent=1 // pred_check
      _
    $region51: #{tpu_custom_call.1} parent=1 // pred_check_branch
      %1053 = sbr.rel (0) target = $region53
    $region52: #{tpu_custom_call.1} parent=1 // pred_region
      %1055 = vsyncadd [#allocation7], 0
      %s1056 = sshll.u32 [#allocation11], 4
      %s1057 = int_to_ptr.vmem [resolvable:$true] %s1056
      %s1058 = sshll.u32 %s10, 4
      %s1059 = int_to_ptr.hbm [resolvable:$true] %s1058
      %1064 = dma.vmem_to_hbm [thread:$0]  %s1057, 256, %s1059, [#allocation7], 128, 128, 8
    $region53: #{tpu_custom_call.1} parent=1 // pred_fallthru
      _
    // Predicated region
    $region54: #{tpu_custom_call.1} parent=1 // pred_check
      _
    $region55: #{tpu_custom_call.1} parent=1 // pred_check_branch
      %1066 = sbr.rel (0) target = $region57
    $region56: #{tpu_custom_call.1} parent=1 // pred_region
      %1068 = dma.done [#allocation7], 256
    $region57: #{tpu_custom_call.1} parent=1 // pred_fallthru
      _
    %1069 = vsyncpa [#allocation6], 1
    %1070 = vsyncpa [#allocation9], 1
    %1071 = vsyncpa [#allocation7], 1

</llo_original>
